<compile_context>
chip_gen: v6e
topology: v6e:2x2x1
jax: 0.10.0
libtpu: 0.0.40
codegen_flags: <defaults>
</compile_context>

<pallas_src>
import jax
import jax.numpy as jnp
from jax import lax
from jax.experimental import pallas as pl
from jax.experimental.pallas import tpu as pltpu

NEG_SLOPE = 0.01  # PyTorch nn.LeakyReLU default


def _disc_kernel(x_ref, w1_ref, bw_ref, b2_ref, o_ref):
    n_chunks = w1_ref.shape[0]
    tb = x_ref.shape[0]

    # Cast the (small) x tile to the matmul dtype once, after the DMA.
    xb = x_ref[...].astype(w1_ref.dtype)

    def chunk(c, z):
        w1c = w1_ref[c]                      # (D, hc)  bf16, resident in VMEM
        bwc = bw_ref[c]                      # (2, hc)  f32: row0 = b1, row1 = w2
        # First linear layer for this hidden chunk (MXU, f32 accumulation).
        h = jnp.dot(xb, w1c, preferred_element_type=jnp.float32)   # (tb, hc)
        h = h + bwc[0:1, :]                                        # + b1 chunk
        h = jnp.where(h > 0, h, NEG_SLOPE * h)                     # LeakyReLU
        # Second linear layer for this chunk: (1,hc) . (tb,hc)^T -> (1, tb).
        # Output lands batch-on-lanes, matching the lane-dense o_ref block.
        z_c = lax.dot_general(bwc[1:2, :], h, (((1,), (1,)), ((), ())),
                              preferred_element_type=jnp.float32)
        return z + z_c

    z = lax.fori_loop(0, n_chunks, chunk,
                      jnp.zeros((1, tb), jnp.float32), unroll=True)
    z = z + b2_ref[0]                                   # scalar bias from SMEM
    o_ref[...] = (1.0 / (1.0 + jnp.exp(-z))).astype(o_ref.dtype)   # sigmoid


def prepare_discriminator_params(w1, b1, w2, b2, *,
                                 matmul_dtype=jnp.bfloat16, hidden_chunk=512):
    """One-time parameter prep (do NOT call per forward pass).

    w1: [D, H], b1: [H], w2: [H, 1], b2: [1].
    Returns (w1_chunked [n,D,hc] matmul_dtype, bw_chunked [n,2,hc] f32, b2 [1] f32).
    """
    D, H = w1.shape
    hc = hidden_chunk if (H % hidden_chunk == 0 and H >= hidden_chunk) else H
    n_chunks = H // hc

    w1_c = w1.astype(matmul_dtype).reshape(D, n_chunks, hc).transpose(1, 0, 2)
    bw = jnp.stack([jnp.reshape(b1, (-1,)), jnp.reshape(w2, (-1,))],
                   axis=0).astype(jnp.float32)                      # (2, H)
    bw_c = bw.reshape(2, n_chunks, hc).transpose(1, 0, 2)           # (n, 2, hc)
    b2_s = jnp.reshape(b2, (1,)).astype(jnp.float32)
    return w1_c, bw_c, b2_s


def _ceil_to(a, m):
    return ((a + m - 1) // m) * m


def discriminator_forward(x, w1_c, bw_c, b2_s, *, tile_b=256):
    """x: [B, D]; prepared params from prepare_discriminator_params. Returns [B, 1]."""
    B, D = x.shape
    n_chunks, _, hc = w1_c.shape

    # Batch tile: multiple of 8 sublanes; no padding of x (cdiv grid, masked tail).
    tb = min(_ceil_to(tile_b, 8), _ceil_to(B, 8))
    if B >= 16 and pl.cdiv(B, tb) < 2:
        # v7x has 2 TensorCores: make sure the "parallel" batch axis has >= 2 steps.
        tb = max(8, _ceil_to(pl.cdiv(B, 2), 8))
    if B <= 8:
        tb = B  # block equals full batch dim at tiny B
    num_tiles = pl.cdiv(B, tb)

    out = pl.pallas_call(
        _disc_kernel,
        out_shape=jax.ShapeDtypeStruct((num_tiles, tb), x.dtype),
        grid_spec=pltpu.PrefetchScalarGridSpec(
            num_scalar_prefetch=0,
            grid=(num_tiles,),
            in_specs=[
                pl.BlockSpec((tb, D), lambda i: (i, 0)),                # x tile
                pl.BlockSpec((n_chunks, D, hc), lambda i: (0, 0, 0)),   # W1 (resident)
                pl.BlockSpec((n_chunks, 2, hc), lambda i: (0, 0, 0)),   # [b1; w2] rows
                pl.BlockSpec(memory_space=pltpu.MemorySpace.SMEM),      # b2 scalar
            ],
            out_specs=pl.BlockSpec((1, tb), lambda i: (i, 0)),          # lane-dense out
        ),
        compiler_params=pltpu.CompilerParams(
            dimension_semantics=("parallel",),
        ),
    )(x, w1_c, bw_c, b2_s)

    return out.reshape(num_tiles * tb)[:B].reshape(B, 1)


def reference_forward(x, w1, b1, w2, b2, weight_dtype=jnp.bfloat16):
    # Matches the kernel's precision choices (bf16 matmul operands, f32 math).
    h = jnp.dot(x.astype(weight_dtype), w1.astype(weight_dtype),
                preferred_element_type=jnp.float32) + b1
    h = jnp.where(h > 0, h, NEG_SLOPE * h)
    z = h @ w2.astype(jnp.float32) + b2
    return jax.nn.sigmoid(z)


def reference_forward_f32(x, w1, b1, w2, b2):
    h = x @ w1 + b1
    h = jnp.where(h > 0, h, NEG_SLOPE * h)
    z = h @ w2 + b2
    return jax.nn.sigmoid(z)


if __name__ == "__main__":
    # hparams: x_dim=24, attr_dim=8  ->  in_features = 32, hidden = 4096
    x_dim, attr_dim = 24, 8
    in_dim = x_dim + attr_dim
    hidden = 4096
    batch = 2

    key = jax.random.PRNGKey(0)
    kx, kw1, kb1, kw2, kb2 = jax.random.split(key, 5)

    # PyTorch-style uniform(-1/sqrt(fan_in), 1/sqrt(fan_in)) init.
    lim1 = 1.0 / jnp.sqrt(in_dim)
    lim2 = 1.0 / jnp.sqrt(hidden)
    w1 = jax.random.uniform(kw1, (in_dim, hidden), jnp.float32, -lim1, lim1)
    b1 = jax.random.uniform(kb1, (hidden,), jnp.float32, -lim1, lim1)
    w2 = jax.random.uniform(kw2, (hidden, 1), jnp.float32, -lim2, lim2)
    b2 = jax.random.uniform(kb2, (1,), jnp.float32, -lim2, lim2)

    x = jax.random.normal(kx, (batch, in_dim), jnp.float32)

    params = prepare_discriminator_params(w1, b1, w2, b2)   # one-time prep
    out = discriminator_forward(x, *params)
    out = jax.block_until_ready(out)
    assert out.shape == (batch, 1)

    # Exact-ish check against a reference using the same bf16 matmul operands.
    ref = reference_forward(x, w1, b1, w2, b2)
    assert jnp.allclose(out, ref, atol=1e-4, rtol=1e-4), (out, ref)

    # Loose sanity check against the full-f32 reference (bf16 weight cast).
    ref32 = reference_forward_f32(x, w1, b1, w2, b2)
    assert jnp.allclose(out, ref32, atol=2e-2, rtol=2e-2), (out, ref32)

    print("KERNEL_OK")
</pallas_src>

<mosaic_0001>
module attributes {stable_mosaic.version = 11 : i64} {
  func.func @_disc_kernel(%arg0: i32, %arg1: memref<2x32xf32, #tpu.memory_space<vmem>>, %arg2: memref<8x32x512xbf16, #tpu.memory_space<vmem>>, %arg3: memref<8x2x512xf32, #tpu.memory_space<vmem>>, %arg4: memref<1xf32, #tpu.memory_space<smem>>, %arg5: memref<1x2xf32, #tpu.memory_space<vmem>>) attributes {dimension_semantics = [#tpu.dimension_semantics<parallel>], iteration_bounds = array<i64: 1>, scalar_prefetch = 0 : i64, scratch_operands = 0 : i64, tpu.core_type = #tpu.core_type<tc>, window_params = [{transform_indices = @transform_0, window_bounds = array<i64: 2, 32>}, {pipeline_mode = #tpu.pipeline_mode<synchronous>, transform_indices = @transform_1, window_bounds = array<i64: 8, 32, 512>}, {pipeline_mode = #tpu.pipeline_mode<synchronous>, transform_indices = @transform_2, window_bounds = array<i64: 8, 2, 512>}, {transform_indices = @transform_3, window_bounds = array<i64: 1>}, {transform_indices = @transform_4, window_bounds = array<i64: 1, 2>}]} {
    %c0 = arith.constant 0 : index
    %c0_0 = arith.constant 0 : index
    %0 = vector.load %arg1[%c0, %c0_0] : memref<2x32xf32, #tpu.memory_space<vmem>>, vector<2x32xf32>
    %1 = arith.truncf %0 : vector<2x32xf32> to vector<2x32xbf16>
    %cst = arith.constant 0.000000e+00 : f32
    %2 = vector.broadcast %cst : f32 to vector<1x2xf32>
    %c0_i32 = arith.constant 0 : i32
    %3 = arith.index_cast %c0_i32 : i32 to index
    %c0_1 = arith.constant 0 : index
    %c0_2 = arith.constant 0 : index
    %4 = vector.load %arg2[%3, %c0_1, %c0_2] : memref<8x32x512xbf16, #tpu.memory_space<vmem>>, vector<1x32x512xbf16>
    %5 = vector.shape_cast %4 : vector<1x32x512xbf16> to vector<32x512xbf16>
    %6 = arith.index_cast %c0_i32 : i32 to index
    %c0_3 = arith.constant 0 : index
    %c0_4 = arith.constant 0 : index
    %7 = vector.load %arg3[%6, %c0_3, %c0_4] : memref<8x2x512xf32, #tpu.memory_space<vmem>>, vector<1x2x512xf32>
    %8 = vector.shape_cast %7 : vector<1x2x512xf32> to vector<2x512xf32>
    %cst_5 = arith.constant dense<0.000000e+00> : vector<2x512xf32>
    %9 = tpu.matmul %1, %5, %cst_5 {dimension_numbers = #tpu.dot_dimension_numbers<[1], [0], [0], [1], [0, 0, 1, 1], [], []>} : vector<2x32xbf16>, vector<32x512xbf16>, vector<2x512xf32> -> vector<2x512xf32>
    %10 = vector.extract_strided_slice %8 {offsets = [0, 0], sizes = [1, 512], strides = [1, 1]} : vector<2x512xf32> to vector<1x512xf32>
    %11 = vector.broadcast %10 : vector<1x512xf32> to vector<2x512xf32>
    %12 = arith.addf %9, %11 : vector<2x512xf32>
    %cst_6 = arith.constant 0.000000e+00 : f32
    %13 = vector.broadcast %cst_6 : f32 to vector<2x512xf32>
    %14 = arith.cmpf ogt, %12, %13 : vector<2x512xf32>
    %cst_7 = arith.constant 0.00999999977 : f32
    %15 = vector.broadcast %cst_7 : f32 to vector<2x512xf32>
    %16 = arith.mulf %15, %12 : vector<2x512xf32>
    %17 = arith.select %14, %12, %16 : vector<2x512xi1>, vector<2x512xf32>
    %18 = vector.extract_strided_slice %8 {offsets = [1, 0], sizes = [1, 512], strides = [1, 1]} : vector<2x512xf32> to vector<1x512xf32>
    %cst_8 = arith.constant dense<0.000000e+00> : vector<1x2xf32>
    %19 = tpu.matmul %18, %17, %cst_8 {dimension_numbers = #tpu.dot_dimension_numbers<[1], [1], [0], [0], [0, 0, 1, 0], [], []>} : vector<1x512xf32>, vector<2x512xf32>, vector<1x2xf32> -> vector<1x2xf32>
    %20 = arith.addf %2, %19 : vector<1x2xf32>
    %c1_i32 = arith.constant 1 : i32
    %21 = arith.index_cast %c1_i32 : i32 to index
    %c0_9 = arith.constant 0 : index
    %c0_10 = arith.constant 0 : index
    %22 = vector.load %arg2[%21, %c0_9, %c0_10] : memref<8x32x512xbf16, #tpu.memory_space<vmem>>, vector<1x32x512xbf16>
    %23 = vector.shape_cast %22 : vector<1x32x512xbf16> to vector<32x512xbf16>
    %24 = arith.index_cast %c1_i32 : i32 to index
    %c0_11 = arith.constant 0 : index
    %c0_12 = arith.constant 0 : index
    %25 = vector.load %arg3[%24, %c0_11, %c0_12] : memref<8x2x512xf32, #tpu.memory_space<vmem>>, vector<1x2x512xf32>
    %26 = vector.shape_cast %25 : vector<1x2x512xf32> to vector<2x512xf32>
    %cst_13 = arith.constant dense<0.000000e+00> : vector<2x512xf32>
    %27 = tpu.matmul %1, %23, %cst_13 {dimension_numbers = #tpu.dot_dimension_numbers<[1], [0], [0], [1], [0, 0, 1, 1], [], []>} : vector<2x32xbf16>, vector<32x512xbf16>, vector<2x512xf32> -> vector<2x512xf32>
    %28 = vector.extract_strided_slice %26 {offsets = [0, 0], sizes = [1, 512], strides = [1, 1]} : vector<2x512xf32> to vector<1x512xf32>
    %29 = vector.broadcast %28 : vector<1x512xf32> to vector<2x512xf32>
    %30 = arith.addf %27, %29 : vector<2x512xf32>
    %cst_14 = arith.constant 0.000000e+00 : f32
    %31 = vector.broadcast %cst_14 : f32 to vector<2x512xf32>
    %32 = arith.cmpf ogt, %30, %31 : vector<2x512xf32>
    %cst_15 = arith.constant 0.00999999977 : f32
    %33 = vector.broadcast %cst_15 : f32 to vector<2x512xf32>
    %34 = arith.mulf %33, %30 : vector<2x512xf32>
    %35 = arith.select %32, %30, %34 : vector<2x512xi1>, vector<2x512xf32>
    %36 = vector.extract_strided_slice %26 {offsets = [1, 0], sizes = [1, 512], strides = [1, 1]} : vector<2x512xf32> to vector<1x512xf32>
    %cst_16 = arith.constant dense<0.000000e+00> : vector<1x2xf32>
    %37 = tpu.matmul %36, %35, %cst_16 {dimension_numbers = #tpu.dot_dimension_numbers<[1], [1], [0], [0], [0, 0, 1, 0], [], []>} : vector<1x512xf32>, vector<2x512xf32>, vector<1x2xf32> -> vector<1x2xf32>
    %38 = arith.addf %20, %37 : vector<1x2xf32>
    %c2_i32 = arith.constant 2 : i32
    %39 = arith.index_cast %c2_i32 : i32 to index
    %c0_17 = arith.constant 0 : index
    %c0_18 = arith.constant 0 : index
    %40 = vector.load %arg2[%39, %c0_17, %c0_18] : memref<8x32x512xbf16, #tpu.memory_space<vmem>>, vector<1x32x512xbf16>
    %41 = vector.shape_cast %40 : vector<1x32x512xbf16> to vector<32x512xbf16>
    %42 = arith.index_cast %c2_i32 : i32 to index
    %c0_19 = arith.constant 0 : index
    %c0_20 = arith.constant 0 : index
    %43 = vector.load %arg3[%42, %c0_19, %c0_20] : memref<8x2x512xf32, #tpu.memory_space<vmem>>, vector<1x2x512xf32>
    %44 = vector.shape_cast %43 : vector<1x2x512xf32> to vector<2x512xf32>
    %cst_21 = arith.constant dense<0.000000e+00> : vector<2x512xf32>
    %45 = tpu.matmul %1, %41, %cst_21 {dimension_numbers = #tpu.dot_dimension_numbers<[1], [0], [0], [1], [0, 0, 1, 1], [], []>} : vector<2x32xbf16>, vector<32x512xbf16>, vector<2x512xf32> -> vector<2x512xf32>
    %46 = vector.extract_strided_slice %44 {offsets = [0, 0], sizes = [1, 512], strides = [1, 1]} : vector<2x512xf32> to vector<1x512xf32>
    %47 = vector.broadcast %46 : vector<1x512xf32> to vector<2x512xf32>
    %48 = arith.addf %45, %47 : vector<2x512xf32>
    %cst_22 = arith.constant 0.000000e+00 : f32
    %49 = vector.broadcast %cst_22 : f32 to vector<2x512xf32>
    %50 = arith.cmpf ogt, %48, %49 : vector<2x512xf32>
    %cst_23 = arith.constant 0.00999999977 : f32
    %51 = vector.broadcast %cst_23 : f32 to vector<2x512xf32>
    %52 = arith.mulf %51, %48 : vector<2x512xf32>
    %53 = arith.select %50, %48, %52 : vector<2x512xi1>, vector<2x512xf32>
    %54 = vector.extract_strided_slice %44 {offsets = [1, 0], sizes = [1, 512], strides = [1, 1]} : vector<2x512xf32> to vector<1x512xf32>
    %cst_24 = arith.constant dense<0.000000e+00> : vector<1x2xf32>
    %55 = tpu.matmul %54, %53, %cst_24 {dimension_numbers = #tpu.dot_dimension_numbers<[1], [1], [0], [0], [0, 0, 1, 0], [], []>} : vector<1x512xf32>, vector<2x512xf32>, vector<1x2xf32> -> vector<1x2xf32>
    %56 = arith.addf %38, %55 : vector<1x2xf32>
    %c3_i32 = arith.constant 3 : i32
    %57 = arith.index_cast %c3_i32 : i32 to index
    %c0_25 = arith.constant 0 : index
    %c0_26 = arith.constant 0 : index
    %58 = vector.load %arg2[%57, %c0_25, %c0_26] : memref<8x32x512xbf16, #tpu.memory_space<vmem>>, vector<1x32x512xbf16>
    %59 = vector.shape_cast %58 : vector<1x32x512xbf16> to vector<32x512xbf16>
    %60 = arith.index_cast %c3_i32 : i32 to index
    %c0_27 = arith.constant 0 : index
    %c0_28 = arith.constant 0 : index
    %61 = vector.load %arg3[%60, %c0_27, %c0_28] : memref<8x2x512xf32, #tpu.memory_space<vmem>>, vector<1x2x512xf32>
    %62 = vector.shape_cast %61 : vector<1x2x512xf32> to vector<2x512xf32>
    %cst_29 = arith.constant dense<0.000000e+00> : vector<2x512xf32>
    %63 = tpu.matmul %1, %59, %cst_29 {dimension_numbers = #tpu.dot_dimension_numbers<[1], [0], [0], [1], [0, 0, 1, 1], [], []>} : vector<2x32xbf16>, vector<32x512xbf16>, vector<2x512xf32> -> vector<2x512xf32>
    %64 = vector.extract_strided_slice %62 {offsets = [0, 0], sizes = [1, 512], strides = [1, 1]} : vector<2x512xf32> to vector<1x512xf32>
    %65 = vector.broadcast %64 : vector<1x512xf32> to vector<2x512xf32>
    %66 = arith.addf %63, %65 : vector<2x512xf32>
    %cst_30 = arith.constant 0.000000e+00 : f32
    %67 = vector.broadcast %cst_30 : f32 to vector<2x512xf32>
    %68 = arith.cmpf ogt, %66, %67 : vector<2x512xf32>
    %cst_31 = arith.constant 0.00999999977 : f32
    %69 = vector.broadcast %cst_31 : f32 to vector<2x512xf32>
    %70 = arith.mulf %69, %66 : vector<2x512xf32>
    %71 = arith.select %68, %66, %70 : vector<2x512xi1>, vector<2x512xf32>
    %72 = vector.extract_strided_slice %62 {offsets = [1, 0], sizes = [1, 512], strides = [1, 1]} : vector<2x512xf32> to vector<1x512xf32>
    %cst_32 = arith.constant dense<0.000000e+00> : vector<1x2xf32>
    %73 = tpu.matmul %72, %71, %cst_32 {dimension_numbers = #tpu.dot_dimension_numbers<[1], [1], [0], [0], [0, 0, 1, 0], [], []>} : vector<1x512xf32>, vector<2x512xf32>, vector<1x2xf32> -> vector<1x2xf32>
    %74 = arith.addf %56, %73 : vector<1x2xf32>
    %c4_i32 = arith.constant 4 : i32
    %75 = arith.index_cast %c4_i32 : i32 to index
    %c0_33 = arith.constant 0 : index
    %c0_34 = arith.constant 0 : index
    %76 = vector.load %arg2[%75, %c0_33, %c0_34] : memref<8x32x512xbf16, #tpu.memory_space<vmem>>, vector<1x32x512xbf16>
    %77 = vector.shape_cast %76 : vector<1x32x512xbf16> to vector<32x512xbf16>
    %78 = arith.index_cast %c4_i32 : i32 to index
    %c0_35 = arith.constant 0 : index
    %c0_36 = arith.constant 0 : index
    %79 = vector.load %arg3[%78, %c0_35, %c0_36] : memref<8x2x512xf32, #tpu.memory_space<vmem>>, vector<1x2x512xf32>
    %80 = vector.shape_cast %79 : vector<1x2x512xf32> to vector<2x512xf32>
    %cst_37 = arith.constant dense<0.000000e+00> : vector<2x512xf32>
    %81 = tpu.matmul %1, %77, %cst_37 {dimension_numbers = #tpu.dot_dimension_numbers<[1], [0], [0], [1], [0, 0, 1, 1], [], []>} : vector<2x32xbf16>, vector<32x512xbf16>, vector<2x512xf32> -> vector<2x512xf32>
    %82 = vector.extract_strided_slice %80 {offsets = [0, 0], sizes = [1, 512], strides = [1, 1]} : vector<2x512xf32> to vector<1x512xf32>
    %83 = vector.broadcast %82 : vector<1x512xf32> to vector<2x512xf32>
    %84 = arith.addf %81, %83 : vector<2x512xf32>
    %cst_38 = arith.constant 0.000000e+00 : f32
    %85 = vector.broadcast %cst_38 : f32 to vector<2x512xf32>
    %86 = arith.cmpf ogt, %84, %85 : vector<2x512xf32>
    %cst_39 = arith.constant 0.00999999977 : f32
    %87 = vector.broadcast %cst_39 : f32 to vector<2x512xf32>
    %88 = arith.mulf %87, %84 : vector<2x512xf32>
    %89 = arith.select %86, %84, %88 : vector<2x512xi1>, vector<2x512xf32>
    %90 = vector.extract_strided_slice %80 {offsets = [1, 0], sizes = [1, 512], strides = [1, 1]} : vector<2x512xf32> to vector<1x512xf32>
    %cst_40 = arith.constant dense<0.000000e+00> : vector<1x2xf32>
    %91 = tpu.matmul %90, %89, %cst_40 {dimension_numbers = #tpu.dot_dimension_numbers<[1], [1], [0], [0], [0, 0, 1, 0], [], []>} : vector<1x512xf32>, vector<2x512xf32>, vector<1x2xf32> -> vector<1x2xf32>
    %92 = arith.addf %74, %91 : vector<1x2xf32>
    %c5_i32 = arith.constant 5 : i32
    %93 = arith.index_cast %c5_i32 : i32 to index
    %c0_41 = arith.constant 0 : index
    %c0_42 = arith.constant 0 : index
    %94 = vector.load %arg2[%93, %c0_41, %c0_42] : memref<8x32x512xbf16, #tpu.memory_space<vmem>>, vector<1x32x512xbf16>
    %95 = vector.shape_cast %94 : vector<1x32x512xbf16> to vector<32x512xbf16>
    %96 = arith.index_cast %c5_i32 : i32 to index
    %c0_43 = arith.constant 0 : index
    %c0_44 = arith.constant 0 : index
    %97 = vector.load %arg3[%96, %c0_43, %c0_44] : memref<8x2x512xf32, #tpu.memory_space<vmem>>, vector<1x2x512xf32>
    %98 = vector.shape_cast %97 : vector<1x2x512xf32> to vector<2x512xf32>
    %cst_45 = arith.constant dense<0.000000e+00> : vector<2x512xf32>
    %99 = tpu.matmul %1, %95, %cst_45 {dimension_numbers = #tpu.dot_dimension_numbers<[1], [0], [0], [1], [0, 0, 1, 1], [], []>} : vector<2x32xbf16>, vector<32x512xbf16>, vector<2x512xf32> -> vector<2x512xf32>
    %100 = vector.extract_strided_slice %98 {offsets = [0, 0], sizes = [1, 512], strides = [1, 1]} : vector<2x512xf32> to vector<1x512xf32>
    %101 = vector.broadcast %100 : vector<1x512xf32> to vector<2x512xf32>
    %102 = arith.addf %99, %101 : vector<2x512xf32>
    %cst_46 = arith.constant 0.000000e+00 : f32
    %103 = vector.broadcast %cst_46 : f32 to vector<2x512xf32>
    %104 = arith.cmpf ogt, %102, %103 : vector<2x512xf32>
    %cst_47 = arith.constant 0.00999999977 : f32
    %105 = vector.broadcast %cst_47 : f32 to vector<2x512xf32>
    %106 = arith.mulf %105, %102 : vector<2x512xf32>
    %107 = arith.select %104, %102, %106 : vector<2x512xi1>, vector<2x512xf32>
    %108 = vector.extract_strided_slice %98 {offsets = [1, 0], sizes = [1, 512], strides = [1, 1]} : vector<2x512xf32> to vector<1x512xf32>
    %cst_48 = arith.constant dense<0.000000e+00> : vector<1x2xf32>
    %109 = tpu.matmul %108, %107, %cst_48 {dimension_numbers = #tpu.dot_dimension_numbers<[1], [1], [0], [0], [0, 0, 1, 0], [], []>} : vector<1x512xf32>, vector<2x512xf32>, vector<1x2xf32> -> vector<1x2xf32>
    %110 = arith.addf %92, %109 : vector<1x2xf32>
    %c6_i32 = arith.constant 6 : i32
    %111 = arith.index_cast %c6_i32 : i32 to index
    %c0_49 = arith.constant 0 : index
    %c0_50 = arith.constant 0 : index
    %112 = vector.load %arg2[%111, %c0_49, %c0_50] : memref<8x32x512xbf16, #tpu.memory_space<vmem>>, vector<1x32x512xbf16>
    %113 = vector.shape_cast %112 : vector<1x32x512xbf16> to vector<32x512xbf16>
    %114 = arith.index_cast %c6_i32 : i32 to index
    %c0_51 = arith.constant 0 : index
    %c0_52 = arith.constant 0 : index
    %115 = vector.load %arg3[%114, %c0_51, %c0_52] : memref<8x2x512xf32, #tpu.memory_space<vmem>>, vector<1x2x512xf32>
    %116 = vector.shape_cast %115 : vector<1x2x512xf32> to vector<2x512xf32>
    %cst_53 = arith.constant dense<0.000000e+00> : vector<2x512xf32>
    %117 = tpu.matmul %1, %113, %cst_53 {dimension_numbers = #tpu.dot_dimension_numbers<[1], [0], [0], [1], [0, 0, 1, 1], [], []>} : vector<2x32xbf16>, vector<32x512xbf16>, vector<2x512xf32> -> vector<2x512xf32>
    %118 = vector.extract_strided_slice %116 {offsets = [0, 0], sizes = [1, 512], strides = [1, 1]} : vector<2x512xf32> to vector<1x512xf32>
    %119 = vector.broadcast %118 : vector<1x512xf32> to vector<2x512xf32>
    %120 = arith.addf %117, %119 : vector<2x512xf32>
    %cst_54 = arith.constant 0.000000e+00 : f32
    %121 = vector.broadcast %cst_54 : f32 to vector<2x512xf32>
    %122 = arith.cmpf ogt, %120, %121 : vector<2x512xf32>
    %cst_55 = arith.constant 0.00999999977 : f32
    %123 = vector.broadcast %cst_55 : f32 to vector<2x512xf32>
    %124 = arith.mulf %123, %120 : vector<2x512xf32>
    %125 = arith.select %122, %120, %124 : vector<2x512xi1>, vector<2x512xf32>
    %126 = vector.extract_strided_slice %116 {offsets = [1, 0], sizes = [1, 512], strides = [1, 1]} : vector<2x512xf32> to vector<1x512xf32>
    %cst_56 = arith.constant dense<0.000000e+00> : vector<1x2xf32>
    %127 = tpu.matmul %126, %125, %cst_56 {dimension_numbers = #tpu.dot_dimension_numbers<[1], [1], [0], [0], [0, 0, 1, 0], [], []>} : vector<1x512xf32>, vector<2x512xf32>, vector<1x2xf32> -> vector<1x2xf32>
    %128 = arith.addf %110, %127 : vector<1x2xf32>
    %c7_i32 = arith.constant 7 : i32
    %129 = arith.index_cast %c7_i32 : i32 to index
    %c0_57 = arith.constant 0 : index
    %c0_58 = arith.constant 0 : index
    %130 = vector.load %arg2[%129, %c0_57, %c0_58] : memref<8x32x512xbf16, #tpu.memory_space<vmem>>, vector<1x32x512xbf16>
    %131 = vector.shape_cast %130 : vector<1x32x512xbf16> to vector<32x512xbf16>
    %132 = arith.index_cast %c7_i32 : i32 to index
    %c0_59 = arith.constant 0 : index
    %c0_60 = arith.constant 0 : index
    %133 = vector.load %arg3[%132, %c0_59, %c0_60] : memref<8x2x512xf32, #tpu.memory_space<vmem>>, vector<1x2x512xf32>
    %134 = vector.shape_cast %133 : vector<1x2x512xf32> to vector<2x512xf32>
    %cst_61 = arith.constant dense<0.000000e+00> : vector<2x512xf32>
    %135 = tpu.matmul %1, %131, %cst_61 {dimension_numbers = #tpu.dot_dimension_numbers<[1], [0], [0], [1], [0, 0, 1, 1], [], []>} : vector<2x32xbf16>, vector<32x512xbf16>, vector<2x512xf32> -> vector<2x512xf32>
    %136 = vector.extract_strided_slice %134 {offsets = [0, 0], sizes = [1, 512], strides = [1, 1]} : vector<2x512xf32> to vector<1x512xf32>
    %137 = vector.broadcast %136 : vector<1x512xf32> to vector<2x512xf32>
    %138 = arith.addf %135, %137 : vector<2x512xf32>
    %cst_62 = arith.constant 0.000000e+00 : f32
    %139 = vector.broadcast %cst_62 : f32 to vector<2x512xf32>
    %140 = arith.cmpf ogt, %138, %139 : vector<2x512xf32>
    %cst_63 = arith.constant 0.00999999977 : f32
    %141 = vector.broadcast %cst_63 : f32 to vector<2x512xf32>
    %142 = arith.mulf %141, %138 : vector<2x512xf32>
    %143 = arith.select %140, %138, %142 : vector<2x512xi1>, vector<2x512xf32>
    %144 = vector.extract_strided_slice %134 {offsets = [1, 0], sizes = [1, 512], strides = [1, 1]} : vector<2x512xf32> to vector<1x512xf32>
    %cst_64 = arith.constant dense<0.000000e+00> : vector<1x2xf32>
    %145 = tpu.matmul %144, %143, %cst_64 {dimension_numbers = #tpu.dot_dimension_numbers<[1], [1], [0], [0], [0, 0, 1, 0], [], []>} : vector<1x512xf32>, vector<2x512xf32>, vector<1x2xf32> -> vector<1x2xf32>
    %146 = arith.addf %128, %145 : vector<1x2xf32>
    %c8_i32 = arith.constant 8 : i32
    %c0_65 = arith.constant 0 : index
    %147 = memref.load %arg4[%c0_65] : memref<1xf32, #tpu.memory_space<smem>>
    %148 = vector.broadcast %147 : f32 to vector<1x2xf32>
    %149 = arith.addf %146, %148 : vector<1x2xf32>
    %cst_66 = arith.constant 0.000000e+00 : f32
    %150 = vector.broadcast %cst_66 : f32 to vector<1x2xf32>
    %151 = arith.subf %150, %149 : vector<1x2xf32>
    %152 = math.exp %151 : vector<1x2xf32>
    %cst_67 = arith.constant 1.000000e+00 : f32
    %153 = vector.broadcast %cst_67 : f32 to vector<1x2xf32>
    %154 = arith.addf %153, %152 : vector<1x2xf32>
    %cst_68 = arith.constant 1.000000e+00 : f32
    %155 = vector.broadcast %cst_68 : f32 to vector<1x2xf32>
    %156 = arith.divf %155, %154 : vector<1x2xf32>
    %c0_69 = arith.constant 0 : index
    %c0_70 = arith.constant 0 : index
    %157 = vector.load %arg5[%c0_69, %c0_70] : memref<1x2xf32, #tpu.memory_space<vmem>>, vector<1x2xf32>
    tpu.vector_store %arg5[%c0_69, %c0_70], %156 {strides = array<i32>} : memref<1x2xf32, #tpu.memory_space<vmem>>, vector<1x2xf32>,
    return
  }
  func.func @transform_0(%arg0: i32) -> (i32, i32) {
    %c0_i32 = arith.constant 0 : i32
    %c0_i32_0 = arith.constant 0 : i32
    return %arg0, %c0_i32 : i32, i32
  }
  func.func @transform_1(%arg0: i32) -> (i32, i32, i32) {
    %c0_i32 = arith.constant 0 : i32
    %c0_i32_0 = arith.constant 0 : i32
    %c0_i32_1 = arith.constant 0 : i32
    %c0_i32_2 = arith.constant 0 : i32
    return %c0_i32, %c0_i32_0, %c0_i32_1 : i32, i32, i32
  }
  func.func @transform_2(%arg0: i32) -> (i32, i32, i32) {
    %c0_i32 = arith.constant 0 : i32
    %c0_i32_0 = arith.constant 0 : i32
    %c0_i32_1 = arith.constant 0 : i32
    %c0_i32_2 = arith.constant 0 : i32
    return %c0_i32, %c0_i32_0, %c0_i32_1 : i32, i32, i32
  }
  func.func @transform_3(%arg0: i32) -> i32 {
    %c0_i32 = arith.constant 0 : i32
    %c0_i32_0 = arith.constant 0 : i32
    return %c0_i32 : i32
  }
  func.func @transform_4(%arg0: i32) -> (i32, i32) {
    %c0_i32 = arith.constant 0 : i32
    %c0_i32_0 = arith.constant 0 : i32
    return %arg0, %c0_i32 : i32, i32
  }
}

</mosaic_0001>

<llo_original>
// kernel: tpu_custom_call.1
$region0: #{tpu_custom_call.1}
  #allocation0 [shape = 'u32[]', space=smem, size = 0x4, offset = 0x4, fixed_abs, tag = 'smem constant byte address 0x4 - core index']
  #allocation1 [shape = 'u32[144,128]{1,0:T(1,128)}', space=vmem, size = 0x12000, scoped, tag = 'internal scratch']
  #allocation2 [shape = 'f32[1]{0:T(128)S(6)}', space=smem, size = 0x200, scoped, tag = 'scoped memory for tpu_custom_call.1']
  %s0 = inlined_call_operand.vmem [shape: f32[2,32], index: 0, kind: input, shape index: {}]
  %s1 = inlined_call_operand.hbm [shape: bf16[8,32,512], index: 1, kind: input, shape index: {}]
  %s2 = inlined_call_operand.hbm [shape: f32[8,2,512], index: 2, kind: input, shape index: {}]
  %s3 = inlined_call_operand.<no memory space> [shape: f32[1], index: 3, kind: input, shape index: {}]
  %s4 = inlined_call_operand.hbm [shape: f32[1,2], index: 4, kind: output, shape index: {}]
  %s5 = sld [smem:[#allocation0]]
  $region34: #{tpu_custom_call.1} parent=0
    _
  %s7 = ssub.s32 1, %s5
  %s8 = scalar_select 0, %s7, %s5
  %9 = sst [smem:[#allocation2]] %s3
  $region1: #{tpu_custom_call.1} parent=0
    #allocation3 [shape = 'u8[262144]{0}', space=vmem, size = 0x40000, scoped, tag = 'input window, operand 1, single buffered']
    #allocation4 [shape = 's32[1]{0}', space=sflag, size = 0x4, scoped, tag = 'scoped memory for tpu_custom_call.1']
    #allocation5 [shape = 's32[1]{0}', space=sflag, size = 0x4, scoped, tag = 'scoped memory for tpu_custom_call.1']
    #allocation6 [shape = 'u8[32768]{0}', space=vmem, size = 0x8000, scoped, tag = 'input window, operand 2, single buffered']
    #allocation7 [shape = 's32[1]{0}', space=sflag, size = 0x4, scoped, tag = 'scoped memory for tpu_custom_call.1']
    #allocation8 [shape = 'u8[512]{0}', space=vmem, size = 0x400, scoped, tag = 'output window, operand 0, single buffered']
    %10 = vsyncpa [#allocation4], 0
    %11 = vsyncpa [#allocation7], 0
    %12 = vsyncpa [#allocation5], 0
    // Predicated region
    $region2: #{tpu_custom_call.1} parent=1 // pred_check
      _
    $region3: #{tpu_custom_call.1} parent=1 // pred_check_branch
      %14 = sbr.rel (0) target = $region5
    $region4: #{tpu_custom_call.1} parent=1 // pred_region
      _
    $region5: #{tpu_custom_call.1} parent=1 // pred_fallthru
      _
    // Predicated region
    $region6: #{tpu_custom_call.1} parent=1 // pred_check
      _
    $region7: #{tpu_custom_call.1} parent=1 // pred_check_branch
      %16 = sbr.rel (0) target = $region9
    $region8: #{tpu_custom_call.1} parent=1 // pred_region
      %s18 = ssub.s32 8192, 8192
      %19 = vsyncadd [#allocation4], %s18
      %s20 = sshll.u32 [#allocation3], 4
      %s21 = int_to_ptr.vmem [resolvable:$true] %s20
      %26 = dma.hbm_to_vmem [thread:$0]  %s1, 8192, %s21, [#allocation4], 256, 256, 16
    $region9: #{tpu_custom_call.1} parent=1 // pred_fallthru
      _
    // Predicated region
    $region10: #{tpu_custom_call.1} parent=1 // pred_check
      _
    $region11: #{tpu_custom_call.1} parent=1 // pred_check_branch
      %28 = sbr.rel (0) target = $region13
    $region12: #{tpu_custom_call.1} parent=1 // pred_region
      %s30 = ssub.s32 1024, 1024
      %31 = vsyncadd [#allocation7], %s30
      %s32 = sshll.u32 [#allocation6], 4
      %s33 = int_to_ptr.vmem [resolvable:$true] %s32
      %38 = dma.hbm_to_vmem [thread:$0]  %s2, 1024, %s33, [#allocation7], 128, 128, 8
    $region13: #{tpu_custom_call.1} parent=1 // pred_fallthru
      _
    // Predicated region
    $region14: #{tpu_custom_call.1} parent=1 // pred_check
      _
    $region15: #{tpu_custom_call.1} parent=1 // pred_check_branch
      %40 = sbr.rel (0) target = $region17
    $region16: #{tpu_custom_call.1} parent=1 // pred_region
      _
    $region17: #{tpu_custom_call.1} parent=1 // pred_fallthru
      _
    // Predicated region
    $region18: #{tpu_custom_call.1} parent=1 // pred_check
      _
    $region19: #{tpu_custom_call.1} parent=1 // pred_check_branch
      %42 = sbr.rel (0) target = $region21
    $region20: #{tpu_custom_call.1} parent=1 // pred_region
      %43 = dma.done [#allocation4], 8192
    $region21: #{tpu_custom_call.1} parent=1 // pred_fallthru
      _
    // Predicated region
    $region22: #{tpu_custom_call.1} parent=1 // pred_check
      _
    $region23: #{tpu_custom_call.1} parent=1 // pred_check_branch
      %45 = sbr.rel (0) target = $region25
    $region24: #{tpu_custom_call.1} parent=1 // pred_region
      %46 = dma.done [#allocation7], 1024
    $region25: #{tpu_custom_call.1} parent=1 // pred_fallthru
      _
    %v48 = vld [vmem:[%s0] sm:$0x3]
    %v49 = vpack.c.bf16 %v48, %v48
    %v50 = vld [vmem:[#allocation3] sm:$0xff]
    %v51 = vld [vmem:[#allocation3 + $0x8] sm:$0xff]
    %v52 = vld [vmem:[#allocation3 + $0x10] sm:$0xff]
    %v53 = vld [vmem:[#allocation3 + $0x18] sm:$0xff]
    %v54 = vld [vmem:[#allocation3 + $0x20] sm:$0xff]
    %v55 = vld [vmem:[#allocation3 + $0x28] sm:$0xff]
    %v56 = vld [vmem:[#allocation3 + $0x30] sm:$0xff]
    %v57 = vld [vmem:[#allocation3 + $0x38] sm:$0xff]
    %v58 = vld [vmem:[#allocation6] sm:$0xff]
    %v60 = vlaneseq
    %v61 = vshrl.u32 %v60, 7
    %v62 = vsub.s32 0, %v61
    %v63 = vrot.slane %v58, %v62
    %v64 = vlaneseq
    %v65 = vshrl.u32 %v64, 7
    %v66 = vsub.s32 2, %v65
    %v67 = vrot.slane %v58, %v66
    %v68 = vlaneseq
    %v69 = vshrl.u32 %v68, 7
    %v70 = vsub.s32 4, %v69
    %v71 = vrot.slane %v58, %v70
    %v72 = vlaneseq
    %v73 = vshrl.u32 %v72, 7
    %v74 = vsub.s32 6, %v73
    %v75 = vrot.slane %v58, %v74
    %v80 = vlaneseq
    %v81 = vshrl.u32 %v80, 7
    %v82 = vsub.s32 0, %v81
    %v83 = vrot.slane %v63, %v82
    %v84 = vlaneseq
    %v85 = vshrl.u32 %v84, 7
    %v86 = vsub.s32 0, %v85
    %v87 = vrot.slane %v67, %v86
    %v88 = vlaneseq
    %v89 = vshrl.u32 %v88, 7
    %v90 = vsub.s32 0, %v89
    %v91 = vrot.slane %v71, %v90
    %v92 = vlaneseq
    %v93 = vshrl.u32 %v92, 7
    %v94 = vsub.s32 0, %v93
    %v95 = vrot.slane %v75, %v94
    %v104 = vunpack.c.l.b16 %v50
    %v105 = vunpack.c.h.b16 %v50
    %v106 = vunpack.c.l.b16 %v51
    %v107 = vunpack.c.h.b16 %v51
    %v108 = vunpack.c.l.b16 %v52
    %v109 = vunpack.c.h.b16 %v52
    %v110 = vunpack.c.l.b16 %v53
    %v111 = vunpack.c.h.b16 %v53
    %v112 = vunpack.c.l.b16 %v54
    %v113 = vunpack.c.h.b16 %v54
    %v114 = vunpack.c.l.b16 %v55
    %v115 = vunpack.c.h.b16 %v55
    %v116 = vunpack.c.l.b16 %v56
    %v117 = vunpack.c.h.b16 %v56
    %v118 = vunpack.c.l.b16 %v57
    %v119 = vunpack.c.h.b16 %v57
    %v120 = vpack.c.b16 %v108, %v104
    %v121 = vpack.c.b16 %v109, %v105
    %v122 = vpack.c.b16 %v110, %v106
    %v123 = vpack.c.b16 %v111, %v107
    %v124 = vpack.c.b16 %v116, %v112
    %v125 = vpack.c.b16 %v117, %v113
    %v126 = vpack.c.b16 %v118, %v114
    %v127 = vpack.c.b16 %v119, %v115
    %vm136 = vcmask 261120
    %v138 = vsel %vm136, %v49, 0
    %140 = vmatprep.subr.bf16.mxu0 0
    %141 = vmatpush1.bf16.msra.mxu0 0
    %142 = vmatprep.subr.bf16.mxu0 0
    %143 = vmatpush1.bf16.msra.mxu0 0
    %144 = vmatprep.subr.bf16.mxu0 0
    %145 = vmatpush1.bf16.msra.mxu0 0
    %146 = vmatprep.subr.bf16.mxu0 0
    %147 = vmatpush1.bf16.msra.mxu0 0
    %148 = vmatprep.subr.bf16.mxu0 0
    %149 = vmatpush1.bf16.msra.mxu0 0
    %150 = vmatprep.subr.bf16.mxu0 0
    %151 = vmatpush1.bf16.msra.mxu0 0
    %152 = vmatprep.subr.bf16.mxu0 %v125
    %153 = vmatpush1.bf16.msra.mxu0 %v124
    %154 = vmatprep.subr.bf16.mxu0 %v121
    %155 = vmatpush1.bf16.msra.mxu0 %v120
    %156 = vmatprep.subr.bf16.mxu0 0
    %157 = vmatpush2.bf16.msra.mxu0 0
    %158 = vmatprep.subr.bf16.mxu0 0
    %159 = vmatpush2.bf16.msra.mxu0 0
    %160 = vmatprep.subr.bf16.mxu0 0
    %161 = vmatpush2.bf16.msra.mxu0 0
    %162 = vmatprep.subr.bf16.mxu0 0
    %163 = vmatpush2.bf16.msra.mxu0 0
    %164 = vmatprep.subr.bf16.mxu0 0
    %165 = vmatpush2.bf16.msra.mxu0 0
    %166 = vmatprep.subr.bf16.mxu0 0
    %167 = vmatpush2.bf16.msra.mxu0 0
    %168 = vmatprep.subr.bf16.mxu0 0
    %169 = vmatpush2.bf16.msra.mxu0 0
    %170 = vmatprep.subr.bf16.mxu0 0
    %171 = vmatpush2.bf16.msra.mxu0 0
    %172 = vmatprep.mubr.bf16.mxu0 0
    %173 = vmatmul.mubr.bf16.gmra.mxu0 %v138
    %v174 = vpop.f32.mrf.mxu0
    %v175 = vadd.f32 %v83, %v174
    %v176 = vpop.f32.mrf.mxu0
    %v177 = vadd.f32 %v87, %v176
    %v178 = vpop.f32.mrf.mxu0
    %v179 = vpop.f32.mrf.mxu0
    %180 = vdwg.mxu0
    %181 = vmatprep.subr.bf16.mxu0 0
    %182 = vmatpush1.bf16.msra.mxu0 0
    %183 = vmatprep.subr.bf16.mxu0 0
    %184 = vmatpush1.bf16.msra.mxu0 0
    %185 = vmatprep.subr.bf16.mxu0 0
    %186 = vmatpush1.bf16.msra.mxu0 0
    %187 = vmatprep.subr.bf16.mxu0 0
    %188 = vmatpush1.bf16.msra.mxu0 0
    %189 = vmatprep.subr.bf16.mxu0 0
    %190 = vmatpush1.bf16.msra.mxu0 0
    %191 = vmatprep.subr.bf16.mxu0 0
    %192 = vmatpush1.bf16.msra.mxu0 0
    %193 = vmatprep.subr.bf16.mxu0 %v127
    %194 = vmatpush1.bf16.msra.mxu0 %v126
    %195 = vmatprep.subr.bf16.mxu0 %v123
    %196 = vmatpush1.bf16.msra.mxu0 %v122
    %197 = vmatprep.subr.bf16.mxu0 0
    %198 = vmatpush2.bf16.msra.mxu0 0
    %199 = vmatprep.subr.bf16.mxu0 0
    %200 = vmatpush2.bf16.msra.mxu0 0
    %201 = vmatprep.subr.bf16.mxu0 0
    %202 = vmatpush2.bf16.msra.mxu0 0
    %203 = vmatprep.subr.bf16.mxu0 0
    %204 = vmatpush2.bf16.msra.mxu0 0
    %205 = vmatprep.subr.bf16.mxu0 0
    %206 = vmatpush2.bf16.msra.mxu0 0
    %207 = vmatprep.subr.bf16.mxu0 0
    %208 = vmatpush2.bf16.msra.mxu0 0
    %209 = vmatprep.subr.bf16.mxu0 0
    %210 = vmatpush2.bf16.msra.mxu0 0
    %211 = vmatprep.subr.bf16.mxu0 0
    %212 = vmatpush2.bf16.msra.mxu0 0
    %213 = vmatprep.mubr.bf16.mxu0 0
    %214 = vmatmul.mubr.bf16.gmra.mxu0 %v138
    %v215 = vpop.f32.mrf.mxu0
    %v216 = vadd.f32 %v91, %v215
    %v217 = vpop.f32.mrf.mxu0
    %v218 = vadd.f32 %v95, %v217
    %v219 = vpop.f32.mrf.mxu0
    %v220 = vpop.f32.mrf.mxu0
    %221 = vdwg.mxu0
    %vm222 = vcmp.gt.f32.partialorder %v175, 0.0
    %vm223 = vcmp.gt.f32.partialorder %v177, 0.0
    %vm224 = vcmp.gt.f32.partialorder %v216, 0.0
    %vm225 = vcmp.gt.f32.partialorder %v218, 0.0
    %v226 = vmul.f32 %v175, 0.01
    %v227 = vmul.f32 %v177, 0.01
    %v228 = vmul.f32 %v216, 0.01
    %v229 = vmul.f32 %v218, 0.01
    %v230 = vsel %vm222, %v175, %v226
    %v231 = vsel %vm223, %v177, %v227
    %v232 = vsel %vm224, %v216, %v228
    %v233 = vsel %vm225, %v218, %v229
    %s234 = scalar_lea.vmem [#allocation3], 64
    %v235 = vld [vmem:[%s234] sm:$0xff]
    %v236 = vld [vmem:[%s234 + $0x8] sm:$0xff]
    %v237 = vld [vmem:[%s234 + $0x10] sm:$0xff]
    %v238 = vld [vmem:[%s234 + $0x18] sm:$0xff]
    %v239 = vld [vmem:[%s234 + $0x20] sm:$0xff]
    %v240 = vld [vmem:[%s234 + $0x28] sm:$0xff]
    %v241 = vld [vmem:[%s234 + $0x30] sm:$0xff]
    %v242 = vld [vmem:[%s234 + $0x38] sm:$0xff]
    %s243 = scalar_lea.vmem [#allocation6], 8
    %v244 = vld [vmem:[%s243] sm:$0xff]
    %v246 = vlaneseq
    %v247 = vshrl.u32 %v246, 7
    %v248 = vsub.s32 0, %v247
    %v249 = vrot.slane %v244, %v248
    %v250 = vlaneseq
    %v251 = vshrl.u32 %v250, 7
    %v252 = vsub.s32 2, %v251
    %v253 = vrot.slane %v244, %v252
    %v254 = vlaneseq
    %v255 = vshrl.u32 %v254, 7
    %v256 = vsub.s32 4, %v255
    %v257 = vrot.slane %v244, %v256
    %v258 = vlaneseq
    %v259 = vshrl.u32 %v258, 7
    %v260 = vsub.s32 6, %v259
    %v261 = vrot.slane %v244, %v260
    %v266 = vlaneseq
    %v267 = vshrl.u32 %v266, 7
    %v268 = vsub.s32 0, %v267
    %v269 = vrot.slane %v249, %v268
    %v270 = vlaneseq
    %v271 = vshrl.u32 %v270, 7
    %v272 = vsub.s32 0, %v271
    %v273 = vrot.slane %v253, %v272
    %v274 = vlaneseq
    %v275 = vshrl.u32 %v274, 7
    %v276 = vsub.s32 0, %v275
    %v277 = vrot.slane %v257, %v276
    %v278 = vlaneseq
    %v279 = vshrl.u32 %v278, 7
    %v280 = vsub.s32 0, %v279
    %v281 = vrot.slane %v261, %v280
    %v290 = vunpack.c.l.b16 %v235
    %v291 = vunpack.c.h.b16 %v235
    %v292 = vunpack.c.l.b16 %v236
    %v293 = vunpack.c.h.b16 %v236
    %v294 = vunpack.c.l.b16 %v237
    %v295 = vunpack.c.h.b16 %v237
    %v296 = vunpack.c.l.b16 %v238
    %v297 = vunpack.c.h.b16 %v238
    %v298 = vunpack.c.l.b16 %v239
    %v299 = vunpack.c.h.b16 %v239
    %v300 = vunpack.c.l.b16 %v240
    %v301 = vunpack.c.h.b16 %v240
    %v302 = vunpack.c.l.b16 %v241
    %v303 = vunpack.c.h.b16 %v241
    %v304 = vunpack.c.l.b16 %v242
    %v305 = vunpack.c.h.b16 %v242
    %v306 = vpack.c.b16 %v294, %v290
    %v307 = vpack.c.b16 %v295, %v291
    %v308 = vpack.c.b16 %v296, %v292
    %v309 = vpack.c.b16 %v297, %v293
    %v310 = vpack.c.b16 %v302, %v298
    %v311 = vpack.c.b16 %v303, %v299
    %v312 = vpack.c.b16 %v304, %v300
    %v313 = vpack.c.b16 %v305, %v301
    %322 = vmatprep.subr.bf16.mxu0 0
    %323 = vmatpush1.bf16.msra.mxu0 0
    %324 = vmatprep.subr.bf16.mxu0 0
    %325 = vmatpush1.bf16.msra.mxu0 0
    %326 = vmatprep.subr.bf16.mxu0 0
    %327 = vmatpush1.bf16.msra.mxu0 0
    %328 = vmatprep.subr.bf16.mxu0 0
    %329 = vmatpush1.bf16.msra.mxu0 0
    %330 = vmatprep.subr.bf16.mxu0 0
    %331 = vmatpush1.bf16.msra.mxu0 0
    %332 = vmatprep.subr.bf16.mxu0 0
    %333 = vmatpush1.bf16.msra.mxu0 0
    %334 = vmatprep.subr.bf16.mxu0 %v311
    %335 = vmatpush1.bf16.msra.mxu0 %v310
    %336 = vmatprep.subr.bf16.mxu0 %v307
    %337 = vmatpush1.bf16.msra.mxu0 %v306
    %338 = vmatprep.subr.bf16.mxu0 0
    %339 = vmatpush2.bf16.msra.mxu0 0
    %340 = vmatprep.subr.bf16.mxu0 0
    %341 = vmatpush2.bf16.msra.mxu0 0
    %342 = vmatprep.subr.bf16.mxu0 0
    %343 = vmatpush2.bf16.msra.mxu0 0
    %344 = vmatprep.subr.bf16.mxu0 0
    %345 = vmatpush2.bf16.msra.mxu0 0
    %346 = vmatprep.subr.bf16.mxu0 0
    %347 = vmatpush2.bf16.msra.mxu0 0
    %348 = vmatprep.subr.bf16.mxu0 0
    %349 = vmatpush2.bf16.msra.mxu0 0
    %350 = vmatprep.subr.bf16.mxu0 0
    %351 = vmatpush2.bf16.msra.mxu0 0
    %352 = vmatprep.subr.bf16.mxu0 0
    %353 = vmatpush2.bf16.msra.mxu0 0
    %354 = vmatprep.mubr.bf16.mxu0 0
    %355 = vmatmul.mubr.bf16.gmra.mxu0 %v138
    %v356 = vpop.f32.mrf.mxu0
    %v357 = vadd.f32 %v269, %v356
    %v358 = vpop.f32.mrf.mxu0
    %v359 = vadd.f32 %v273, %v358
    %v360 = vpop.f32.mrf.mxu0
    %v361 = vpop.f32.mrf.mxu0
    %362 = vdwg.mxu0
    %363 = vmatprep.subr.bf16.mxu0 0
    %364 = vmatpush1.bf16.msra.mxu0 0
    %365 = vmatprep.subr.bf16.mxu0 0
    %366 = vmatpush1.bf16.msra.mxu0 0
    %367 = vmatprep.subr.bf16.mxu0 0
    %368 = vmatpush1.bf16.msra.mxu0 0
    %369 = vmatprep.subr.bf16.mxu0 0
    %370 = vmatpush1.bf16.msra.mxu0 0
    %371 = vmatprep.subr.bf16.mxu0 0
    %372 = vmatpush1.bf16.msra.mxu0 0
    %373 = vmatprep.subr.bf16.mxu0 0
    %374 = vmatpush1.bf16.msra.mxu0 0
    %375 = vmatprep.subr.bf16.mxu0 %v313
    %376 = vmatpush1.bf16.msra.mxu0 %v312
    %377 = vmatprep.subr.bf16.mxu0 %v309
    %378 = vmatpush1.bf16.msra.mxu0 %v308
    %379 = vmatprep.subr.bf16.mxu0 0
    %380 = vmatpush2.bf16.msra.mxu0 0
    %381 = vmatprep.subr.bf16.mxu0 0
    %382 = vmatpush2.bf16.msra.mxu0 0
    %383 = vmatprep.subr.bf16.mxu0 0
    %384 = vmatpush2.bf16.msra.mxu0 0
    %385 = vmatprep.subr.bf16.mxu0 0
    %386 = vmatpush2.bf16.msra.mxu0 0
    %387 = vmatprep.subr.bf16.mxu0 0
    %388 = vmatpush2.bf16.msra.mxu0 0
    %389 = vmatprep.subr.bf16.mxu0 0
    %390 = vmatpush2.bf16.msra.mxu0 0
    %391 = vmatprep.subr.bf16.mxu0 0
    %392 = vmatpush2.bf16.msra.mxu0 0
    %393 = vmatprep.subr.bf16.mxu0 0
    %394 = vmatpush2.bf16.msra.mxu0 0
    %395 = vmatprep.mubr.bf16.mxu0 0
    %396 = vmatmul.mubr.bf16.gmra.mxu0 %v138
    %v397 = vpop.f32.mrf.mxu0
    %v398 = vadd.f32 %v277, %v397
    %v399 = vpop.f32.mrf.mxu0
    %v400 = vadd.f32 %v281, %v399
    %v401 = vpop.f32.mrf.mxu0
    %v402 = vpop.f32.mrf.mxu0
    %403 = vdwg.mxu0
    %vm404 = vcmp.gt.f32.partialorder %v357, 0.0
    %vm405 = vcmp.gt.f32.partialorder %v359, 0.0
    %vm406 = vcmp.gt.f32.partialorder %v398, 0.0
    %vm407 = vcmp.gt.f32.partialorder %v400, 0.0
    %v408 = vmul.f32 %v357, 0.01
    %v409 = vmul.f32 %v359, 0.01
    %v410 = vmul.f32 %v398, 0.01
    %v411 = vmul.f32 %v400, 0.01
    %v412 = vsel %vm404, %v357, %v408
    %v413 = vsel %vm405, %v359, %v409
    %v414 = vsel %vm406, %v398, %v410
    %v415 = vsel %vm407, %v400, %v411
    %v416 = vlaneseq
    %v417 = vshrl.u32 %v416, 7
    %v418 = vsub.s32 1, %v417
    %v419 = vrot.slane %v244, %v418
    %v420 = vlaneseq
    %v421 = vshrl.u32 %v420, 7
    %v422 = vsub.s32 3, %v421
    %v423 = vrot.slane %v244, %v422
    %v424 = vlaneseq
    %v425 = vshrl.u32 %v424, 7
    %v426 = vsub.s32 5, %v425
    %v427 = vrot.slane %v244, %v426
    %v428 = vlaneseq
    %v429 = vshrl.u32 %v428, 7
    %v430 = vsub.s32 7, %v429
    %v431 = vrot.slane %v244, %v430
    %436 = vmatprep.subr.mxu0 0.0
    %437 = vmatpush1.xpose.msra.mxu0 0.0
    %438 = vmatprep.subr.mxu0 0.0
    %439 = vmatpush1.xpose.msra.mxu0 0.0
    %440 = vmatprep.subr.mxu0 0.0
    %441 = vmatpush1.xpose.msra.mxu0 0.0
    %442 = vmatprep.subr.mxu0 0.0
    %443 = vmatpush1.xpose.msra.mxu0 0.0
    %444 = vmatprep.subr.mxu0 0.0
    %445 = vmatpush1.xpose.msra.mxu0 0.0
    %446 = vmatprep.subr.mxu0 0.0
    %447 = vmatpush1.xpose.msra.mxu0 0.0
    %448 = vmatprep.subr.mxu0 0.0
    %449 = vmatpush1.xpose.msra.mxu0 0.0
    %450 = vmatprep.subr.mxu0 0.0
    %451 = vmatpush1.xpose.msra.mxu0 0.0
    %452 = vmatprep.subr.mxu0 0.0
    %453 = vmatpush1.xpose.msra.mxu0 0.0
    %454 = vmatprep.subr.mxu0 0.0
    %455 = vmatpush1.xpose.msra.mxu0 0.0
    %456 = vmatprep.subr.mxu0 0.0
    %457 = vmatpush1.xpose.msra.mxu0 0.0
    %458 = vmatprep.subr.mxu0 0.0
    %459 = vmatpush1.xpose.msra.mxu0 0.0
    %460 = vmatprep.subr.mxu0 0.0
    %461 = vmatpush1.xpose.msra.mxu0 0.0
    %462 = vmatprep.subr.mxu0 0.0
    %463 = vmatpush1.xpose.msra.mxu0 0.0
    %464 = vmatprep.subr.mxu0 0.0
    %465 = vmatpush1.xpose.msra.mxu0 0.0
    %466 = vmatprep.subr.mxu0 %v413
    %467 = vmatpush1.xpose.msra.mxu0 %v412
    %468 = vmatprep.subr.mxu0 0.0
    %469 = vmatpush2.xpose.msra.mxu0 0.0
    %470 = vmatprep.subr.mxu0 0.0
    %471 = vmatpush2.xpose.msra.mxu0 0.0
    %472 = vmatprep.subr.mxu0 0.0
    %473 = vmatpush2.xpose.msra.mxu0 0.0
    %474 = vmatprep.subr.mxu0 0.0
    %475 = vmatpush2.xpose.msra.mxu0 0.0
    %476 = vmatprep.subr.mxu0 0.0
    %477 = vmatpush2.xpose.msra.mxu0 0.0
    %478 = vmatprep.subr.mxu0 0.0
    %479 = vmatpush2.xpose.msra.mxu0 0.0
    %480 = vmatprep.subr.mxu0 0.0
    %481 = vmatpush2.xpose.msra.mxu0 0.0
    %482 = vmatprep.subr.mxu0 0.0
    %483 = vmatpush2.xpose.msra.mxu0 0.0
    %484 = vmatprep.subr.mxu0 0.0
    %485 = vmatpush2.xpose.msra.mxu0 0.0
    %486 = vmatprep.subr.mxu0 0.0
    %487 = vmatpush2.xpose.msra.mxu0 0.0
    %488 = vmatprep.subr.mxu0 0.0
    %489 = vmatpush2.xpose.msra.mxu0 0.0
    %490 = vmatprep.subr.mxu0 0.0
    %491 = vmatpush2.xpose.msra.mxu0 0.0
    %492 = vmatprep.subr.mxu0 0.0
    %493 = vmatpush2.xpose.msra.mxu0 0.0
    %494 = vmatprep.subr.mxu0 0.0
    %495 = vmatpush2.xpose.msra.mxu0 0.0
    %496 = vmatprep.subr.mxu0 0.0
    %497 = vmatpush2.xpose.msra.mxu0 0.0
    %498 = vmatprep.subr.mxu0 0.0
    %499 = vmatpush2.xpose.msra.mxu0 0.0
    %500 = vmatprep.mubr.f32.mxu0 %v423
    %501 = vmatmul.mubr.f32.gmra.mxu0 %v419
    %v502 = vpop.f32.mrf.mxu0
    %v503 = vadd.f32 0.0, %v502
    %v504 = vpop.f32.mrf.mxu0
    %505 = vdwg.mxu0
    %506 = vmatprep.subr.mxu0 0.0
    %507 = vmatpush1.xpose.msra.mxu0 0.0
    %508 = vmatprep.subr.mxu0 0.0
    %509 = vmatpush1.xpose.msra.mxu0 0.0
    %510 = vmatprep.subr.mxu0 0.0
    %511 = vmatpush1.xpose.msra.mxu0 0.0
    %512 = vmatprep.subr.mxu0 0.0
    %513 = vmatpush1.xpose.msra.mxu0 0.0
    %514 = vmatprep.subr.mxu0 0.0
    %515 = vmatpush1.xpose.msra.mxu0 0.0
    %516 = vmatprep.subr.mxu0 0.0
    %517 = vmatpush1.xpose.msra.mxu0 0.0
    %518 = vmatprep.subr.mxu0 0.0
    %519 = vmatpush1.xpose.msra.mxu0 0.0
    %520 = vmatprep.subr.mxu0 0.0
    %521 = vmatpush1.xpose.msra.mxu0 0.0
    %522 = vmatprep.subr.mxu0 0.0
    %523 = vmatpush1.xpose.msra.mxu0 0.0
    %524 = vmatprep.subr.mxu0 0.0
    %525 = vmatpush1.xpose.msra.mxu0 0.0
    %526 = vmatprep.subr.mxu0 0.0
    %527 = vmatpush1.xpose.msra.mxu0 0.0
    %528 = vmatprep.subr.mxu0 0.0
    %529 = vmatpush1.xpose.msra.mxu0 0.0
    %530 = vmatprep.subr.mxu0 0.0
    %531 = vmatpush1.xpose.msra.mxu0 0.0
    %532 = vmatprep.subr.mxu0 0.0
    %533 = vmatpush1.xpose.msra.mxu0 0.0
    %534 = vmatprep.subr.mxu0 0.0
    %535 = vmatpush1.xpose.msra.mxu0 0.0
    %536 = vmatprep.subr.mxu0 %v415
    %537 = vmatpush1.xpose.msra.mxu0 %v414
    %538 = vmatprep.subr.mxu0 0.0
    %539 = vmatpush2.xpose.msra.mxu0 0.0
    %540 = vmatprep.subr.mxu0 0.0
    %541 = vmatpush2.xpose.msra.mxu0 0.0
    %542 = vmatprep.subr.mxu0 0.0
    %543 = vmatpush2.xpose.msra.mxu0 0.0
    %544 = vmatprep.subr.mxu0 0.0
    %545 = vmatpush2.xpose.msra.mxu0 0.0
    %546 = vmatprep.subr.mxu0 0.0
    %547 = vmatpush2.xpose.msra.mxu0 0.0
    %548 = vmatprep.subr.mxu0 0.0
    %549 = vmatpush2.xpose.msra.mxu0 0.0
    %550 = vmatprep.subr.mxu0 0.0
    %551 = vmatpush2.xpose.msra.mxu0 0.0
    %552 = vmatprep.subr.mxu0 0.0
    %553 = vmatpush2.xpose.msra.mxu0 0.0
    %554 = vmatprep.subr.mxu0 0.0
    %555 = vmatpush2.xpose.msra.mxu0 0.0
    %556 = vmatprep.subr.mxu0 0.0
    %557 = vmatpush2.xpose.msra.mxu0 0.0
    %558 = vmatprep.subr.mxu0 0.0
    %559 = vmatpush2.xpose.msra.mxu0 0.0
    %560 = vmatprep.subr.mxu0 0.0
    %561 = vmatpush2.xpose.msra.mxu0 0.0
    %562 = vmatprep.subr.mxu0 0.0
    %563 = vmatpush2.xpose.msra.mxu0 0.0
    %564 = vmatprep.subr.mxu0 0.0
    %565 = vmatpush2.xpose.msra.mxu0 0.0
    %566 = vmatprep.subr.mxu0 0.0
    %567 = vmatpush2.xpose.msra.mxu0 0.0
    %568 = vmatprep.subr.mxu0 0.0
    %569 = vmatpush2.xpose.msra.mxu0 0.0
    %570 = vmatprep.mubr.f32.mxu0 %v431
    %571 = vmatmul.mubr.f32.gmra.mxu0 %v427
    %v572 = vpop.f32.mrf.mxu0
    %v573 = vadd.f32 %v503, %v572
    %v574 = vpop.f32.mrf.mxu0
    %575 = vdwg.mxu0
    %v576 = vlaneseq
    %v577 = vshrl.u32 %v576, 7
    %v578 = vsub.s32 1, %v577
    %v579 = vrot.slane %v58, %v578
    %v580 = vlaneseq
    %v581 = vshrl.u32 %v580, 7
    %v582 = vsub.s32 3, %v581
    %v583 = vrot.slane %v58, %v582
    %v584 = vlaneseq
    %v585 = vshrl.u32 %v584, 7
    %v586 = vsub.s32 5, %v585
    %v587 = vrot.slane %v58, %v586
    %v588 = vlaneseq
    %v589 = vshrl.u32 %v588, 7
    %v590 = vsub.s32 7, %v589
    %v591 = vrot.slane %v58, %v590
    %596 = vmatprep.subr.mxu0 0.0
    %597 = vmatpush1.xpose.msra.mxu0 0.0
    %598 = vmatprep.subr.mxu0 0.0
    %599 = vmatpush1.xpose.msra.mxu0 0.0
    %600 = vmatprep.subr.mxu0 0.0
    %601 = vmatpush1.xpose.msra.mxu0 0.0
    %602 = vmatprep.subr.mxu0 0.0
    %603 = vmatpush1.xpose.msra.mxu0 0.0
    %604 = vmatprep.subr.mxu0 0.0
    %605 = vmatpush1.xpose.msra.mxu0 0.0
    %606 = vmatprep.subr.mxu0 0.0
    %607 = vmatpush1.xpose.msra.mxu0 0.0
    %608 = vmatprep.subr.mxu0 0.0
    %609 = vmatpush1.xpose.msra.mxu0 0.0
    %610 = vmatprep.subr.mxu0 0.0
    %611 = vmatpush1.xpose.msra.mxu0 0.0
    %612 = vmatprep.subr.mxu0 0.0
    %613 = vmatpush1.xpose.msra.mxu0 0.0
    %614 = vmatprep.subr.mxu0 0.0
    %615 = vmatpush1.xpose.msra.mxu0 0.0
    %616 = vmatprep.subr.mxu0 0.0
    %617 = vmatpush1.xpose.msra.mxu0 0.0
    %618 = vmatprep.subr.mxu0 0.0
    %619 = vmatpush1.xpose.msra.mxu0 0.0
    %620 = vmatprep.subr.mxu0 0.0
    %621 = vmatpush1.xpose.msra.mxu0 0.0
    %622 = vmatprep.subr.mxu0 0.0
    %623 = vmatpush1.xpose.msra.mxu0 0.0
    %624 = vmatprep.subr.mxu0 0.0
    %625 = vmatpush1.xpose.msra.mxu0 0.0
    %626 = vmatprep.subr.mxu0 %v231
    %627 = vmatpush1.xpose.msra.mxu0 %v230
    %628 = vmatprep.subr.mxu0 0.0
    %629 = vmatpush2.xpose.msra.mxu0 0.0
    %630 = vmatprep.subr.mxu0 0.0
    %631 = vmatpush2.xpose.msra.mxu0 0.0
    %632 = vmatprep.subr.mxu0 0.0
    %633 = vmatpush2.xpose.msra.mxu0 0.0
    %634 = vmatprep.subr.mxu0 0.0
    %635 = vmatpush2.xpose.msra.mxu0 0.0
    %636 = vmatprep.subr.mxu0 0.0
    %637 = vmatpush2.xpose.msra.mxu0 0.0
    %638 = vmatprep.subr.mxu0 0.0
    %639 = vmatpush2.xpose.msra.mxu0 0.0
    %640 = vmatprep.subr.mxu0 0.0
    %641 = vmatpush2.xpose.msra.mxu0 0.0
    %642 = vmatprep.subr.mxu0 0.0
    %643 = vmatpush2.xpose.msra.mxu0 0.0
    %644 = vmatprep.subr.mxu0 0.0
    %645 = vmatpush2.xpose.msra.mxu0 0.0
    %646 = vmatprep.subr.mxu0 0.0
    %647 = vmatpush2.xpose.msra.mxu0 0.0
    %648 = vmatprep.subr.mxu0 0.0
    %649 = vmatpush2.xpose.msra.mxu0 0.0
    %650 = vmatprep.subr.mxu0 0.0
    %651 = vmatpush2.xpose.msra.mxu0 0.0
    %652 = vmatprep.subr.mxu0 0.0
    %653 = vmatpush2.xpose.msra.mxu0 0.0
    %654 = vmatprep.subr.mxu0 0.0
    %655 = vmatpush2.xpose.msra.mxu0 0.0
    %656 = vmatprep.subr.mxu0 0.0
    %657 = vmatpush2.xpose.msra.mxu0 0.0
    %658 = vmatprep.subr.mxu0 0.0
    %659 = vmatpush2.xpose.msra.mxu0 0.0
    %660 = vmatprep.mubr.f32.mxu0 %v583
    %661 = vmatmul.mubr.f32.gmra.mxu0 %v579
    %v662 = vpop.f32.mrf.mxu0
    %v663 = vadd.f32 %v573, %v662
    %v664 = vpop.f32.mrf.mxu0
    %665 = vdwg.mxu0
    %666 = vmatprep.subr.mxu0 0.0
    %667 = vmatpush1.xpose.msra.mxu0 0.0
    %668 = vmatprep.subr.mxu0 0.0
    %669 = vmatpush1.xpose.msra.mxu0 0.0
    %670 = vmatprep.subr.mxu0 0.0
    %671 = vmatpush1.xpose.msra.mxu0 0.0
    %672 = vmatprep.subr.mxu0 0.0
    %673 = vmatpush1.xpose.msra.mxu0 0.0
    %674 = vmatprep.subr.mxu0 0.0
    %675 = vmatpush1.xpose.msra.mxu0 0.0
    %676 = vmatprep.subr.mxu0 0.0
    %677 = vmatpush1.xpose.msra.mxu0 0.0
    %678 = vmatprep.subr.mxu0 0.0
    %679 = vmatpush1.xpose.msra.mxu0 0.0
    %680 = vmatprep.subr.mxu0 0.0
    %681 = vmatpush1.xpose.msra.mxu0 0.0
    %682 = vmatprep.subr.mxu0 0.0
    %683 = vmatpush1.xpose.msra.mxu0 0.0
    %684 = vmatprep.subr.mxu0 0.0
    %685 = vmatpush1.xpose.msra.mxu0 0.0
    %686 = vmatprep.subr.mxu0 0.0
    %687 = vmatpush1.xpose.msra.mxu0 0.0
    %688 = vmatprep.subr.mxu0 0.0
    %689 = vmatpush1.xpose.msra.mxu0 0.0
    %690 = vmatprep.subr.mxu0 0.0
    %691 = vmatpush1.xpose.msra.mxu0 0.0
    %692 = vmatprep.subr.mxu0 0.0
    %693 = vmatpush1.xpose.msra.mxu0 0.0
    %694 = vmatprep.subr.mxu0 0.0
    %695 = vmatpush1.xpose.msra.mxu0 0.0
    %696 = vmatprep.subr.mxu0 %v233
    %697 = vmatpush1.xpose.msra.mxu0 %v232
    %698 = vmatprep.subr.mxu0 0.0
    %699 = vmatpush2.xpose.msra.mxu0 0.0
    %700 = vmatprep.subr.mxu0 0.0
    %701 = vmatpush2.xpose.msra.mxu0 0.0
    %702 = vmatprep.subr.mxu0 0.0
    %703 = vmatpush2.xpose.msra.mxu0 0.0
    %704 = vmatprep.subr.mxu0 0.0
    %705 = vmatpush2.xpose.msra.mxu0 0.0
    %706 = vmatprep.subr.mxu0 0.0
    %707 = vmatpush2.xpose.msra.mxu0 0.0
    %708 = vmatprep.subr.mxu0 0.0
    %709 = vmatpush2.xpose.msra.mxu0 0.0
    %710 = vmatprep.subr.mxu0 0.0
    %711 = vmatpush2.xpose.msra.mxu0 0.0
    %712 = vmatprep.subr.mxu0 0.0
    %713 = vmatpush2.xpose.msra.mxu0 0.0
    %714 = vmatprep.subr.mxu0 0.0
    %715 = vmatpush2.xpose.msra.mxu0 0.0
    %716 = vmatprep.subr.mxu0 0.0
    %717 = vmatpush2.xpose.msra.mxu0 0.0
    %718 = vmatprep.subr.mxu0 0.0
    %719 = vmatpush2.xpose.msra.mxu0 0.0
    %720 = vmatprep.subr.mxu0 0.0
    %721 = vmatpush2.xpose.msra.mxu0 0.0
    %722 = vmatprep.subr.mxu0 0.0
    %723 = vmatpush2.xpose.msra.mxu0 0.0
    %724 = vmatprep.subr.mxu0 0.0
    %725 = vmatpush2.xpose.msra.mxu0 0.0
    %726 = vmatprep.subr.mxu0 0.0
    %727 = vmatpush2.xpose.msra.mxu0 0.0
    %728 = vmatprep.subr.mxu0 0.0
    %729 = vmatpush2.xpose.msra.mxu0 0.0
    %730 = vmatprep.mubr.f32.mxu0 %v591
    %731 = vmatmul.mubr.f32.gmra.mxu0 %v587
    %v732 = vpop.f32.mrf.mxu0
    %v733 = vadd.f32 %v663, %v732
    %v734 = vpop.f32.mrf.mxu0
    %735 = vdwg.mxu0
    %s736 = scalar_lea.vmem [#allocation3], 128
    %v737 = vld [vmem:[%s736] sm:$0xff]
    %v738 = vld [vmem:[%s736 + $0x8] sm:$0xff]
    %v739 = vld [vmem:[%s736 + $0x10] sm:$0xff]
    %v740 = vld [vmem:[%s736 + $0x18] sm:$0xff]
    %v741 = vld [vmem:[%s736 + $0x20] sm:$0xff]
    %v742 = vld [vmem:[%s736 + $0x28] sm:$0xff]
    %v743 = vld [vmem:[%s736 + $0x30] sm:$0xff]
    %v744 = vld [vmem:[%s736 + $0x38] sm:$0xff]
    %s745 = scalar_lea.vmem [#allocation6], 16
    %v746 = vld [vmem:[%s745] sm:$0xff]
    %v748 = vlaneseq
    %v749 = vshrl.u32 %v748, 7
    %v750 = vsub.s32 0, %v749
    %v751 = vrot.slane %v746, %v750
    %v752 = vlaneseq
    %v753 = vshrl.u32 %v752, 7
    %v754 = vsub.s32 2, %v753
    %v755 = vrot.slane %v746, %v754
    %v756 = vlaneseq
    %v757 = vshrl.u32 %v756, 7
    %v758 = vsub.s32 4, %v757
    %v759 = vrot.slane %v746, %v758
    %v760 = vlaneseq
    %v761 = vshrl.u32 %v760, 7
    %v762 = vsub.s32 6, %v761
    %v763 = vrot.slane %v746, %v762
    %v768 = vlaneseq
    %v769 = vshrl.u32 %v768, 7
    %v770 = vsub.s32 0, %v769
    %v771 = vrot.slane %v751, %v770
    %v772 = vlaneseq
    %v773 = vshrl.u32 %v772, 7
    %v774 = vsub.s32 0, %v773
    %v775 = vrot.slane %v755, %v774
    %v776 = vlaneseq
    %v777 = vshrl.u32 %v776, 7
    %v778 = vsub.s32 0, %v777
    %v779 = vrot.slane %v759, %v778
    %v780 = vlaneseq
    %v781 = vshrl.u32 %v780, 7
    %v782 = vsub.s32 0, %v781
    %v783 = vrot.slane %v763, %v782
    %v792 = vunpack.c.l.b16 %v737
    %v793 = vunpack.c.h.b16 %v737
    %v794 = vunpack.c.l.b16 %v738
    %v795 = vunpack.c.h.b16 %v738
    %v796 = vunpack.c.l.b16 %v739
    %v797 = vunpack.c.h.b16 %v739
    %v798 = vunpack.c.l.b16 %v740
    %v799 = vunpack.c.h.b16 %v740
    %v800 = vunpack.c.l.b16 %v741
    %v801 = vunpack.c.h.b16 %v741
    %v802 = vunpack.c.l.b16 %v742
    %v803 = vunpack.c.h.b16 %v742
    %v804 = vunpack.c.l.b16 %v743
    %v805 = vunpack.c.h.b16 %v743
    %v806 = vunpack.c.l.b16 %v744
    %v807 = vunpack.c.h.b16 %v744
    %v808 = vpack.c.b16 %v796, %v792
    %v809 = vpack.c.b16 %v797, %v793
    %v810 = vpack.c.b16 %v798, %v794
    %v811 = vpack.c.b16 %v799, %v795
    %v812 = vpack.c.b16 %v804, %v800
    %v813 = vpack.c.b16 %v805, %v801
    %v814 = vpack.c.b16 %v806, %v802
    %v815 = vpack.c.b16 %v807, %v803
    %824 = vmatprep.subr.bf16.mxu0 0
    %825 = vmatpush1.bf16.msra.mxu0 0
    %826 = vmatprep.subr.bf16.mxu0 0
    %827 = vmatpush1.bf16.msra.mxu0 0
    %828 = vmatprep.subr.bf16.mxu0 0
    %829 = vmatpush1.bf16.msra.mxu0 0
    %830 = vmatprep.subr.bf16.mxu0 0
    %831 = vmatpush1.bf16.msra.mxu0 0
    %832 = vmatprep.subr.bf16.mxu0 0
    %833 = vmatpush1.bf16.msra.mxu0 0
    %834 = vmatprep.subr.bf16.mxu0 0
    %835 = vmatpush1.bf16.msra.mxu0 0
    %836 = vmatprep.subr.bf16.mxu0 %v813
    %837 = vmatpush1.bf16.msra.mxu0 %v812
    %838 = vmatprep.subr.bf16.mxu0 %v809
    %839 = vmatpush1.bf16.msra.mxu0 %v808
    %840 = vmatprep.subr.bf16.mxu0 0
    %841 = vmatpush2.bf16.msra.mxu0 0
    %842 = vmatprep.subr.bf16.mxu0 0
    %843 = vmatpush2.bf16.msra.mxu0 0
    %844 = vmatprep.subr.bf16.mxu0 0
    %845 = vmatpush2.bf16.msra.mxu0 0
    %846 = vmatprep.subr.bf16.mxu0 0
    %847 = vmatpush2.bf16.msra.mxu0 0
    %848 = vmatprep.subr.bf16.mxu0 0
    %849 = vmatpush2.bf16.msra.mxu0 0
    %850 = vmatprep.subr.bf16.mxu0 0
    %851 = vmatpush2.bf16.msra.mxu0 0
    %852 = vmatprep.subr.bf16.mxu0 0
    %853 = vmatpush2.bf16.msra.mxu0 0
    %854 = vmatprep.subr.bf16.mxu0 0
    %855 = vmatpush2.bf16.msra.mxu0 0
    %856 = vmatprep.mubr.bf16.mxu0 0
    %857 = vmatmul.mubr.bf16.gmra.mxu0 %v138
    %v858 = vpop.f32.mrf.mxu0
    %v859 = vadd.f32 %v771, %v858
    %v860 = vpop.f32.mrf.mxu0
    %v861 = vadd.f32 %v775, %v860
    %v862 = vpop.f32.mrf.mxu0
    %v863 = vpop.f32.mrf.mxu0
    %864 = vdwg.mxu0
    %865 = vmatprep.subr.bf16.mxu0 0
    %866 = vmatpush1.bf16.msra.mxu0 0
    %867 = vmatprep.subr.bf16.mxu0 0
    %868 = vmatpush1.bf16.msra.mxu0 0
    %869 = vmatprep.subr.bf16.mxu0 0
    %870 = vmatpush1.bf16.msra.mxu0 0
    %871 = vmatprep.subr.bf16.mxu0 0
    %872 = vmatpush1.bf16.msra.mxu0 0
    %873 = vmatprep.subr.bf16.mxu0 0
    %874 = vmatpush1.bf16.msra.mxu0 0
    %875 = vmatprep.subr.bf16.mxu0 0
    %876 = vmatpush1.bf16.msra.mxu0 0
    %877 = vmatprep.subr.bf16.mxu0 %v815
    %878 = vmatpush1.bf16.msra.mxu0 %v814
    %879 = vmatprep.subr.bf16.mxu0 %v811
    %880 = vmatpush1.bf16.msra.mxu0 %v810
    %881 = vmatprep.subr.bf16.mxu0 0
    %882 = vmatpush2.bf16.msra.mxu0 0
    %883 = vmatprep.subr.bf16.mxu0 0
    %884 = vmatpush2.bf16.msra.mxu0 0
    %885 = vmatprep.subr.bf16.mxu0 0
    %886 = vmatpush2.bf16.msra.mxu0 0
    %887 = vmatprep.subr.bf16.mxu0 0
    %888 = vmatpush2.bf16.msra.mxu0 0
    %889 = vmatprep.subr.bf16.mxu0 0
    %890 = vmatpush2.bf16.msra.mxu0 0
    %891 = vmatprep.subr.bf16.mxu0 0
    %892 = vmatpush2.bf16.msra.mxu0 0
    %893 = vmatprep.subr.bf16.mxu0 0
    %894 = vmatpush2.bf16.msra.mxu0 0
    %895 = vmatprep.subr.bf16.mxu0 0
    %896 = vmatpush2.bf16.msra.mxu0 0
    %897 = vmatprep.mubr.bf16.mxu0 0
    %898 = vmatmul.mubr.bf16.gmra.mxu0 %v138
    %v899 = vpop.f32.mrf.mxu0
    %v900 = vadd.f32 %v779, %v899
    %v901 = vpop.f32.mrf.mxu0
    %v902 = vadd.f32 %v783, %v901
    %v903 = vpop.f32.mrf.mxu0
    %v904 = vpop.f32.mrf.mxu0
    %905 = vdwg.mxu0
    %vm906 = vcmp.gt.f32.partialorder %v859, 0.0
    %vm907 = vcmp.gt.f32.partialorder %v861, 0.0
    %vm908 = vcmp.gt.f32.partialorder %v900, 0.0
    %vm909 = vcmp.gt.f32.partialorder %v902, 0.0
    %v910 = vmul.f32 %v859, 0.01
    %v911 = vmul.f32 %v861, 0.01
    %v912 = vmul.f32 %v900, 0.01
    %v913 = vmul.f32 %v902, 0.01
    %v914 = vsel %vm906, %v859, %v910
    %v915 = vsel %vm907, %v861, %v911
    %v916 = vsel %vm908, %v900, %v912
    %v917 = vsel %vm909, %v902, %v913
    %v918 = vlaneseq
    %v919 = vshrl.u32 %v918, 7
    %v920 = vsub.s32 1, %v919
    %v921 = vrot.slane %v746, %v920
    %v922 = vlaneseq
    %v923 = vshrl.u32 %v922, 7
    %v924 = vsub.s32 3, %v923
    %v925 = vrot.slane %v746, %v924
    %v926 = vlaneseq
    %v927 = vshrl.u32 %v926, 7
    %v928 = vsub.s32 5, %v927
    %v929 = vrot.slane %v746, %v928
    %v930 = vlaneseq
    %v931 = vshrl.u32 %v930, 7
    %v932 = vsub.s32 7, %v931
    %v933 = vrot.slane %v746, %v932
    %938 = vmatprep.subr.mxu0 0.0
    %939 = vmatpush1.xpose.msra.mxu0 0.0
    %940 = vmatprep.subr.mxu0 0.0
    %941 = vmatpush1.xpose.msra.mxu0 0.0
    %942 = vmatprep.subr.mxu0 0.0
    %943 = vmatpush1.xpose.msra.mxu0 0.0
    %944 = vmatprep.subr.mxu0 0.0
    %945 = vmatpush1.xpose.msra.mxu0 0.0
    %946 = vmatprep.subr.mxu0 0.0
    %947 = vmatpush1.xpose.msra.mxu0 0.0
    %948 = vmatprep.subr.mxu0 0.0
    %949 = vmatpush1.xpose.msra.mxu0 0.0
    %950 = vmatprep.subr.mxu0 0.0
    %951 = vmatpush1.xpose.msra.mxu0 0.0
    %952 = vmatprep.subr.mxu0 0.0
    %953 = vmatpush1.xpose.msra.mxu0 0.0
    %954 = vmatprep.subr.mxu0 0.0
    %955 = vmatpush1.xpose.msra.mxu0 0.0
    %956 = vmatprep.subr.mxu0 0.0
    %957 = vmatpush1.xpose.msra.mxu0 0.0
    %958 = vmatprep.subr.mxu0 0.0
    %959 = vmatpush1.xpose.msra.mxu0 0.0
    %960 = vmatprep.subr.mxu0 0.0
    %961 = vmatpush1.xpose.msra.mxu0 0.0
    %962 = vmatprep.subr.mxu0 0.0
    %963 = vmatpush1.xpose.msra.mxu0 0.0
    %964 = vmatprep.subr.mxu0 0.0
    %965 = vmatpush1.xpose.msra.mxu0 0.0
    %966 = vmatprep.subr.mxu0 0.0
    %967 = vmatpush1.xpose.msra.mxu0 0.0
    %968 = vmatprep.subr.mxu0 %v915
    %969 = vmatpush1.xpose.msra.mxu0 %v914
    %970 = vmatprep.subr.mxu0 0.0
    %971 = vmatpush2.xpose.msra.mxu0 0.0
    %972 = vmatprep.subr.mxu0 0.0
    %973 = vmatpush2.xpose.msra.mxu0 0.0
    %974 = vmatprep.subr.mxu0 0.0
    %975 = vmatpush2.xpose.msra.mxu0 0.0
    %976 = vmatprep.subr.mxu0 0.0
    %977 = vmatpush2.xpose.msra.mxu0 0.0
    %978 = vmatprep.subr.mxu0 0.0
    %979 = vmatpush2.xpose.msra.mxu0 0.0
    %980 = vmatprep.subr.mxu0 0.0
    %981 = vmatpush2.xpose.msra.mxu0 0.0
    %982 = vmatprep.subr.mxu0 0.0
    %983 = vmatpush2.xpose.msra.mxu0 0.0
    %984 = vmatprep.subr.mxu0 0.0
    %985 = vmatpush2.xpose.msra.mxu0 0.0
    %986 = vmatprep.subr.mxu0 0.0
    %987 = vmatpush2.xpose.msra.mxu0 0.0
    %988 = vmatprep.subr.mxu0 0.0
    %989 = vmatpush2.xpose.msra.mxu0 0.0
    %990 = vmatprep.subr.mxu0 0.0
    %991 = vmatpush2.xpose.msra.mxu0 0.0
    %992 = vmatprep.subr.mxu0 0.0
    %993 = vmatpush2.xpose.msra.mxu0 0.0
    %994 = vmatprep.subr.mxu0 0.0
    %995 = vmatpush2.xpose.msra.mxu0 0.0
    %996 = vmatprep.subr.mxu0 0.0
    %997 = vmatpush2.xpose.msra.mxu0 0.0
    %998 = vmatprep.subr.mxu0 0.0
    %999 = vmatpush2.xpose.msra.mxu0 0.0
    %1000 = vmatprep.subr.mxu0 0.0
    %1001 = vmatpush2.xpose.msra.mxu0 0.0
    %1002 = vmatprep.mubr.f32.mxu0 %v925
    %1003 = vmatmul.mubr.f32.gmra.mxu0 %v921
    %v1004 = vpop.f32.mrf.mxu0
    %v1005 = vadd.f32 0.0, %v1004
    %v1006 = vpop.f32.mrf.mxu0
    %1007 = vdwg.mxu0
    %1008 = vmatprep.subr.mxu0 0.0
    %1009 = vmatpush1.xpose.msra.mxu0 0.0
    %1010 = vmatprep.subr.mxu0 0.0
    %1011 = vmatpush1.xpose.msra.mxu0 0.0
    %1012 = vmatprep.subr.mxu0 0.0
    %1013 = vmatpush1.xpose.msra.mxu0 0.0
    %1014 = vmatprep.subr.mxu0 0.0
    %1015 = vmatpush1.xpose.msra.mxu0 0.0
    %1016 = vmatprep.subr.mxu0 0.0
    %1017 = vmatpush1.xpose.msra.mxu0 0.0
    %1018 = vmatprep.subr.mxu0 0.0
    %1019 = vmatpush1.xpose.msra.mxu0 0.0
    %1020 = vmatprep.subr.mxu0 0.0
    %1021 = vmatpush1.xpose.msra.mxu0 0.0
    %1022 = vmatprep.subr.mxu0 0.0
    %1023 = vmatpush1.xpose.msra.mxu0 0.0
    %1024 = vmatprep.subr.mxu0 0.0
    %1025 = vmatpush1.xpose.msra.mxu0 0.0
    %1026 = vmatprep.subr.mxu0 0.0
    %1027 = vmatpush1.xpose.msra.mxu0 0.0
    %1028 = vmatprep.subr.mxu0 0.0
    %1029 = vmatpush1.xpose.msra.mxu0 0.0
    %1030 = vmatprep.subr.mxu0 0.0
    %1031 = vmatpush1.xpose.msra.mxu0 0.0
    %1032 = vmatprep.subr.mxu0 0.0
    %1033 = vmatpush1.xpose.msra.mxu0 0.0
    %1034 = vmatprep.subr.mxu0 0.0
    %1035 = vmatpush1.xpose.msra.mxu0 0.0
    %1036 = vmatprep.subr.mxu0 0.0
    %1037 = vmatpush1.xpose.msra.mxu0 0.0
    %1038 = vmatprep.subr.mxu0 %v917
    %1039 = vmatpush1.xpose.msra.mxu0 %v916
    %1040 = vmatprep.subr.mxu0 0.0
    %1041 = vmatpush2.xpose.msra.mxu0 0.0
    %1042 = vmatprep.subr.mxu0 0.0
    %1043 = vmatpush2.xpose.msra.mxu0 0.0
    %1044 = vmatprep.subr.mxu0 0.0
    %1045 = vmatpush2.xpose.msra.mxu0 0.0
    %1046 = vmatprep.subr.mxu0 0.0
    %1047 = vmatpush2.xpose.msra.mxu0 0.0
    %1048 = vmatprep.subr.mxu0 0.0
    %1049 = vmatpush2.xpose.msra.mxu0 0.0
    %1050 = vmatprep.subr.mxu0 0.0
    %1051 = vmatpush2.xpose.msra.mxu0 0.0
    %1052 = vmatprep.subr.mxu0 0.0
    %1053 = vmatpush2.xpose.msra.mxu0 0.0
    %1054 = vmatprep.subr.mxu0 0.0
    %1055 = vmatpush2.xpose.msra.mxu0 0.0
    %1056 = vmatprep.subr.mxu0 0.0
    %1057 = vmatpush2.xpose.msra.mxu0 0.0
    %1058 = vmatprep.subr.mxu0 0.0
    %1059 = vmatpush2.xpose.msra.mxu0 0.0
    %1060 = vmatprep.subr.mxu0 0.0
    %1061 = vmatpush2.xpose.msra.mxu0 0.0
    %1062 = vmatprep.subr.mxu0 0.0
    %1063 = vmatpush2.xpose.msra.mxu0 0.0
    %1064 = vmatprep.subr.mxu0 0.0
    %1065 = vmatpush2.xpose.msra.mxu0 0.0
    %1066 = vmatprep.subr.mxu0 0.0
    %1067 = vmatpush2.xpose.msra.mxu0 0.0
    %1068 = vmatprep.subr.mxu0 0.0
    %1069 = vmatpush2.xpose.msra.mxu0 0.0
    %1070 = vmatprep.subr.mxu0 0.0
    %1071 = vmatpush2.xpose.msra.mxu0 0.0
    %1072 = vmatprep.mubr.f32.mxu0 %v933
    %1073 = vmatmul.mubr.f32.gmra.mxu0 %v929
    %v1074 = vpop.f32.mrf.mxu0
    %v1075 = vadd.f32 %v1005, %v1074
    %v1076 = vpop.f32.mrf.mxu0
    %1077 = vdwg.mxu0
    %v1078 = vadd.f32 %v733, %v1075
    %s1079 = scalar_lea.vmem [#allocation3], 192
    %v1080 = vld [vmem:[%s1079] sm:$0xff]
    %v1081 = vld [vmem:[%s1079 + $0x8] sm:$0xff]
    %v1082 = vld [vmem:[%s1079 + $0x10] sm:$0xff]
    %v1083 = vld [vmem:[%s1079 + $0x18] sm:$0xff]
    %v1084 = vld [vmem:[%s1079 + $0x20] sm:$0xff]
    %v1085 = vld [vmem:[%s1079 + $0x28] sm:$0xff]
    %v1086 = vld [vmem:[%s1079 + $0x30] sm:$0xff]
    %v1087 = vld [vmem:[%s1079 + $0x38] sm:$0xff]
    %s1088 = scalar_lea.vmem [#allocation6], 24
    %v1089 = vld [vmem:[%s1088] sm:$0xff]
    %v1091 = vlaneseq
    %v1092 = vshrl.u32 %v1091, 7
    %v1093 = vsub.s32 0, %v1092
    %v1094 = vrot.slane %v1089, %v1093
    %v1095 = vlaneseq
    %v1096 = vshrl.u32 %v1095, 7
    %v1097 = vsub.s32 2, %v1096
    %v1098 = vrot.slane %v1089, %v1097
    %v1099 = vlaneseq
    %v1100 = vshrl.u32 %v1099, 7
    %v1101 = vsub.s32 4, %v1100
    %v1102 = vrot.slane %v1089, %v1101
    %v1103 = vlaneseq
    %v1104 = vshrl.u32 %v1103, 7
    %v1105 = vsub.s32 6, %v1104
    %v1106 = vrot.slane %v1089, %v1105
    %v1111 = vlaneseq
    %v1112 = vshrl.u32 %v1111, 7
    %v1113 = vsub.s32 0, %v1112
    %v1114 = vrot.slane %v1094, %v1113
    %v1115 = vlaneseq
    %v1116 = vshrl.u32 %v1115, 7
    %v1117 = vsub.s32 0, %v1116
    %v1118 = vrot.slane %v1098, %v1117
    %v1119 = vlaneseq
    %v1120 = vshrl.u32 %v1119, 7
    %v1121 = vsub.s32 0, %v1120
    %v1122 = vrot.slane %v1102, %v1121
    %v1123 = vlaneseq
    %v1124 = vshrl.u32 %v1123, 7
    %v1125 = vsub.s32 0, %v1124
    %v1126 = vrot.slane %v1106, %v1125
    %v1135 = vunpack.c.l.b16 %v1080
    %v1136 = vunpack.c.h.b16 %v1080
    %v1137 = vunpack.c.l.b16 %v1081
    %v1138 = vunpack.c.h.b16 %v1081
    %v1139 = vunpack.c.l.b16 %v1082
    %v1140 = vunpack.c.h.b16 %v1082
    %v1141 = vunpack.c.l.b16 %v1083
    %v1142 = vunpack.c.h.b16 %v1083
    %v1143 = vunpack.c.l.b16 %v1084
    %v1144 = vunpack.c.h.b16 %v1084
    %v1145 = vunpack.c.l.b16 %v1085
    %v1146 = vunpack.c.h.b16 %v1085
    %v1147 = vunpack.c.l.b16 %v1086
    %v1148 = vunpack.c.h.b16 %v1086
    %v1149 = vunpack.c.l.b16 %v1087
    %v1150 = vunpack.c.h.b16 %v1087
    %v1151 = vpack.c.b16 %v1139, %v1135
    %v1152 = vpack.c.b16 %v1140, %v1136
    %v1153 = vpack.c.b16 %v1141, %v1137
    %v1154 = vpack.c.b16 %v1142, %v1138
    %v1155 = vpack.c.b16 %v1147, %v1143
    %v1156 = vpack.c.b16 %v1148, %v1144
    %v1157 = vpack.c.b16 %v1149, %v1145
    %v1158 = vpack.c.b16 %v1150, %v1146
    %1167 = vmatprep.subr.bf16.mxu0 0
    %1168 = vmatpush1.bf16.msra.mxu0 0
    %1169 = vmatprep.subr.bf16.mxu0 0
    %1170 = vmatpush1.bf16.msra.mxu0 0
    %1171 = vmatprep.subr.bf16.mxu0 0
    %1172 = vmatpush1.bf16.msra.mxu0 0
    %1173 = vmatprep.subr.bf16.mxu0 0
    %1174 = vmatpush1.bf16.msra.mxu0 0
    %1175 = vmatprep.subr.bf16.mxu0 0
    %1176 = vmatpush1.bf16.msra.mxu0 0
    %1177 = vmatprep.subr.bf16.mxu0 0
    %1178 = vmatpush1.bf16.msra.mxu0 0
    %1179 = vmatprep.subr.bf16.mxu0 %v1156
    %1180 = vmatpush1.bf16.msra.mxu0 %v1155
    %1181 = vmatprep.subr.bf16.mxu0 %v1152
    %1182 = vmatpush1.bf16.msra.mxu0 %v1151
    %1183 = vmatprep.subr.bf16.mxu0 0
    %1184 = vmatpush2.bf16.msra.mxu0 0
    %1185 = vmatprep.subr.bf16.mxu0 0
    %1186 = vmatpush2.bf16.msra.mxu0 0
    %1187 = vmatprep.subr.bf16.mxu0 0
    %1188 = vmatpush2.bf16.msra.mxu0 0
    %1189 = vmatprep.subr.bf16.mxu0 0
    %1190 = vmatpush2.bf16.msra.mxu0 0
    %1191 = vmatprep.subr.bf16.mxu0 0
    %1192 = vmatpush2.bf16.msra.mxu0 0
    %1193 = vmatprep.subr.bf16.mxu0 0
    %1194 = vmatpush2.bf16.msra.mxu0 0
    %1195 = vmatprep.subr.bf16.mxu0 0
    %1196 = vmatpush2.bf16.msra.mxu0 0
    %1197 = vmatprep.subr.bf16.mxu0 0
    %1198 = vmatpush2.bf16.msra.mxu0 0
    %1199 = vmatprep.mubr.bf16.mxu0 0
    %1200 = vmatmul.mubr.bf16.gmra.mxu0 %v138
    %v1201 = vpop.f32.mrf.mxu0
    %v1202 = vadd.f32 %v1114, %v1201
    %v1203 = vpop.f32.mrf.mxu0
    %v1204 = vadd.f32 %v1118, %v1203
    %v1205 = vpop.f32.mrf.mxu0
    %v1206 = vpop.f32.mrf.mxu0
    %1207 = vdwg.mxu0
    %1208 = vmatprep.subr.bf16.mxu0 0
    %1209 = vmatpush1.bf16.msra.mxu0 0
    %1210 = vmatprep.subr.bf16.mxu0 0
    %1211 = vmatpush1.bf16.msra.mxu0 0
    %1212 = vmatprep.subr.bf16.mxu0 0
    %1213 = vmatpush1.bf16.msra.mxu0 0
    %1214 = vmatprep.subr.bf16.mxu0 0
    %1215 = vmatpush1.bf16.msra.mxu0 0
    %1216 = vmatprep.subr.bf16.mxu0 0
    %1217 = vmatpush1.bf16.msra.mxu0 0
    %1218 = vmatprep.subr.bf16.mxu0 0
    %1219 = vmatpush1.bf16.msra.mxu0 0
    %1220 = vmatprep.subr.bf16.mxu0 %v1158
    %1221 = vmatpush1.bf16.msra.mxu0 %v1157
    %1222 = vmatprep.subr.bf16.mxu0 %v1154
    %1223 = vmatpush1.bf16.msra.mxu0 %v1153
    %1224 = vmatprep.subr.bf16.mxu0 0
    %1225 = vmatpush2.bf16.msra.mxu0 0
    %1226 = vmatprep.subr.bf16.mxu0 0
    %1227 = vmatpush2.bf16.msra.mxu0 0
    %1228 = vmatprep.subr.bf16.mxu0 0
    %1229 = vmatpush2.bf16.msra.mxu0 0
    %1230 = vmatprep.subr.bf16.mxu0 0
    %1231 = vmatpush2.bf16.msra.mxu0 0
    %1232 = vmatprep.subr.bf16.mxu0 0
    %1233 = vmatpush2.bf16.msra.mxu0 0
    %1234 = vmatprep.subr.bf16.mxu0 0
    %1235 = vmatpush2.bf16.msra.mxu0 0
    %1236 = vmatprep.subr.bf16.mxu0 0
    %1237 = vmatpush2.bf16.msra.mxu0 0
    %1238 = vmatprep.subr.bf16.mxu0 0
    %1239 = vmatpush2.bf16.msra.mxu0 0
    %1240 = vmatprep.mubr.bf16.mxu0 0
    %1241 = vmatmul.mubr.bf16.gmra.mxu0 %v138
    %v1242 = vpop.f32.mrf.mxu0
    %v1243 = vadd.f32 %v1122, %v1242
    %v1244 = vpop.f32.mrf.mxu0
    %v1245 = vadd.f32 %v1126, %v1244
    %v1246 = vpop.f32.mrf.mxu0
    %v1247 = vpop.f32.mrf.mxu0
    %1248 = vdwg.mxu0
    %vm1249 = vcmp.gt.f32.partialorder %v1202, 0.0
    %vm1250 = vcmp.gt.f32.partialorder %v1204, 0.0
    %vm1251 = vcmp.gt.f32.partialorder %v1243, 0.0
    %vm1252 = vcmp.gt.f32.partialorder %v1245, 0.0
    %v1253 = vmul.f32 %v1202, 0.01
    %v1254 = vmul.f32 %v1204, 0.01
    %v1255 = vmul.f32 %v1243, 0.01
    %v1256 = vmul.f32 %v1245, 0.01
    %v1257 = vsel %vm1249, %v1202, %v1253
    %v1258 = vsel %vm1250, %v1204, %v1254
    %v1259 = vsel %vm1251, %v1243, %v1255
    %v1260 = vsel %vm1252, %v1245, %v1256
    %v1261 = vlaneseq
    %v1262 = vshrl.u32 %v1261, 7
    %v1263 = vsub.s32 1, %v1262
    %v1264 = vrot.slane %v1089, %v1263
    %v1265 = vlaneseq
    %v1266 = vshrl.u32 %v1265, 7
    %v1267 = vsub.s32 3, %v1266
    %v1268 = vrot.slane %v1089, %v1267
    %v1269 = vlaneseq
    %v1270 = vshrl.u32 %v1269, 7
    %v1271 = vsub.s32 5, %v1270
    %v1272 = vrot.slane %v1089, %v1271
    %v1273 = vlaneseq
    %v1274 = vshrl.u32 %v1273, 7
    %v1275 = vsub.s32 7, %v1274
    %v1276 = vrot.slane %v1089, %v1275
    %1281 = vmatprep.subr.mxu0 0.0
    %1282 = vmatpush1.xpose.msra.mxu0 0.0
    %1283 = vmatprep.subr.mxu0 0.0
    %1284 = vmatpush1.xpose.msra.mxu0 0.0
    %1285 = vmatprep.subr.mxu0 0.0
    %1286 = vmatpush1.xpose.msra.mxu0 0.0
    %1287 = vmatprep.subr.mxu0 0.0
    %1288 = vmatpush1.xpose.msra.mxu0 0.0
    %1289 = vmatprep.subr.mxu0 0.0
    %1290 = vmatpush1.xpose.msra.mxu0 0.0
    %1291 = vmatprep.subr.mxu0 0.0
    %1292 = vmatpush1.xpose.msra.mxu0 0.0
    %1293 = vmatprep.subr.mxu0 0.0
    %1294 = vmatpush1.xpose.msra.mxu0 0.0
    %1295 = vmatprep.subr.mxu0 0.0
    %1296 = vmatpush1.xpose.msra.mxu0 0.0
    %1297 = vmatprep.subr.mxu0 0.0
    %1298 = vmatpush1.xpose.msra.mxu0 0.0
    %1299 = vmatprep.subr.mxu0 0.0
    %1300 = vmatpush1.xpose.msra.mxu0 0.0
    %1301 = vmatprep.subr.mxu0 0.0
    %1302 = vmatpush1.xpose.msra.mxu0 0.0
    %1303 = vmatprep.subr.mxu0 0.0
    %1304 = vmatpush1.xpose.msra.mxu0 0.0
    %1305 = vmatprep.subr.mxu0 0.0
    %1306 = vmatpush1.xpose.msra.mxu0 0.0
    %1307 = vmatprep.subr.mxu0 0.0
    %1308 = vmatpush1.xpose.msra.mxu0 0.0
    %1309 = vmatprep.subr.mxu0 0.0
    %1310 = vmatpush1.xpose.msra.mxu0 0.0
    %1311 = vmatprep.subr.mxu0 %v1258
    %1312 = vmatpush1.xpose.msra.mxu0 %v1257
    %1313 = vmatprep.subr.mxu0 0.0
    %1314 = vmatpush2.xpose.msra.mxu0 0.0
    %1315 = vmatprep.subr.mxu0 0.0
    %1316 = vmatpush2.xpose.msra.mxu0 0.0
    %1317 = vmatprep.subr.mxu0 0.0
    %1318 = vmatpush2.xpose.msra.mxu0 0.0
    %1319 = vmatprep.subr.mxu0 0.0
    %1320 = vmatpush2.xpose.msra.mxu0 0.0
    %1321 = vmatprep.subr.mxu0 0.0
    %1322 = vmatpush2.xpose.msra.mxu0 0.0
    %1323 = vmatprep.subr.mxu0 0.0
    %1324 = vmatpush2.xpose.msra.mxu0 0.0
    %1325 = vmatprep.subr.mxu0 0.0
    %1326 = vmatpush2.xpose.msra.mxu0 0.0
    %1327 = vmatprep.subr.mxu0 0.0
    %1328 = vmatpush2.xpose.msra.mxu0 0.0
    %1329 = vmatprep.subr.mxu0 0.0
    %1330 = vmatpush2.xpose.msra.mxu0 0.0
    %1331 = vmatprep.subr.mxu0 0.0
    %1332 = vmatpush2.xpose.msra.mxu0 0.0
    %1333 = vmatprep.subr.mxu0 0.0
    %1334 = vmatpush2.xpose.msra.mxu0 0.0
    %1335 = vmatprep.subr.mxu0 0.0
    %1336 = vmatpush2.xpose.msra.mxu0 0.0
    %1337 = vmatprep.subr.mxu0 0.0
    %1338 = vmatpush2.xpose.msra.mxu0 0.0
    %1339 = vmatprep.subr.mxu0 0.0
    %1340 = vmatpush2.xpose.msra.mxu0 0.0
    %1341 = vmatprep.subr.mxu0 0.0
    %1342 = vmatpush2.xpose.msra.mxu0 0.0
    %1343 = vmatprep.subr.mxu0 0.0
    %1344 = vmatpush2.xpose.msra.mxu0 0.0
    %1345 = vmatprep.mubr.f32.mxu0 %v1268
    %1346 = vmatmul.mubr.f32.gmra.mxu0 %v1264
    %v1347 = vpop.f32.mrf.mxu0
    %v1348 = vadd.f32 0.0, %v1347
    %v1349 = vpop.f32.mrf.mxu0
    %1350 = vdwg.mxu0
    %1351 = vmatprep.subr.mxu0 0.0
    %1352 = vmatpush1.xpose.msra.mxu0 0.0
    %1353 = vmatprep.subr.mxu0 0.0
    %1354 = vmatpush1.xpose.msra.mxu0 0.0
    %1355 = vmatprep.subr.mxu0 0.0
    %1356 = vmatpush1.xpose.msra.mxu0 0.0
    %1357 = vmatprep.subr.mxu0 0.0
    %1358 = vmatpush1.xpose.msra.mxu0 0.0
    %1359 = vmatprep.subr.mxu0 0.0
    %1360 = vmatpush1.xpose.msra.mxu0 0.0
    %1361 = vmatprep.subr.mxu0 0.0
    %1362 = vmatpush1.xpose.msra.mxu0 0.0
    %1363 = vmatprep.subr.mxu0 0.0
    %1364 = vmatpush1.xpose.msra.mxu0 0.0
    %1365 = vmatprep.subr.mxu0 0.0
    %1366 = vmatpush1.xpose.msra.mxu0 0.0
    %1367 = vmatprep.subr.mxu0 0.0
    %1368 = vmatpush1.xpose.msra.mxu0 0.0
    %1369 = vmatprep.subr.mxu0 0.0
    %1370 = vmatpush1.xpose.msra.mxu0 0.0
    %1371 = vmatprep.subr.mxu0 0.0
    %1372 = vmatpush1.xpose.msra.mxu0 0.0
    %1373 = vmatprep.subr.mxu0 0.0
    %1374 = vmatpush1.xpose.msra.mxu0 0.0
    %1375 = vmatprep.subr.mxu0 0.0
    %1376 = vmatpush1.xpose.msra.mxu0 0.0
    %1377 = vmatprep.subr.mxu0 0.0
    %1378 = vmatpush1.xpose.msra.mxu0 0.0
    %1379 = vmatprep.subr.mxu0 0.0
    %1380 = vmatpush1.xpose.msra.mxu0 0.0
    %1381 = vmatprep.subr.mxu0 %v1260
    %1382 = vmatpush1.xpose.msra.mxu0 %v1259
    %1383 = vmatprep.subr.mxu0 0.0
    %1384 = vmatpush2.xpose.msra.mxu0 0.0
    %1385 = vmatprep.subr.mxu0 0.0
    %1386 = vmatpush2.xpose.msra.mxu0 0.0
    %1387 = vmatprep.subr.mxu0 0.0
    %1388 = vmatpush2.xpose.msra.mxu0 0.0
    %1389 = vmatprep.subr.mxu0 0.0
    %1390 = vmatpush2.xpose.msra.mxu0 0.0
    %1391 = vmatprep.subr.mxu0 0.0
    %1392 = vmatpush2.xpose.msra.mxu0 0.0
    %1393 = vmatprep.subr.mxu0 0.0
    %1394 = vmatpush2.xpose.msra.mxu0 0.0
    %1395 = vmatprep.subr.mxu0 0.0
    %1396 = vmatpush2.xpose.msra.mxu0 0.0
    %1397 = vmatprep.subr.mxu0 0.0
    %1398 = vmatpush2.xpose.msra.mxu0 0.0
    %1399 = vmatprep.subr.mxu0 0.0
    %1400 = vmatpush2.xpose.msra.mxu0 0.0
    %1401 = vmatprep.subr.mxu0 0.0
    %1402 = vmatpush2.xpose.msra.mxu0 0.0
    %1403 = vmatprep.subr.mxu0 0.0
    %1404 = vmatpush2.xpose.msra.mxu0 0.0
    %1405 = vmatprep.subr.mxu0 0.0
    %1406 = vmatpush2.xpose.msra.mxu0 0.0
    %1407 = vmatprep.subr.mxu0 0.0
    %1408 = vmatpush2.xpose.msra.mxu0 0.0
    %1409 = vmatprep.subr.mxu0 0.0
    %1410 = vmatpush2.xpose.msra.mxu0 0.0
    %1411 = vmatprep.subr.mxu0 0.0
    %1412 = vmatpush2.xpose.msra.mxu0 0.0
    %1413 = vmatprep.subr.mxu0 0.0
    %1414 = vmatpush2.xpose.msra.mxu0 0.0
    %1415 = vmatprep.mubr.f32.mxu0 %v1276
    %1416 = vmatmul.mubr.f32.gmra.mxu0 %v1272
    %v1417 = vpop.f32.mrf.mxu0
    %v1418 = vadd.f32 %v1348, %v1417
    %v1419 = vpop.f32.mrf.mxu0
    %1420 = vdwg.mxu0
    %v1421 = vadd.f32 %v1078, %v1418
    %s1422 = scalar_lea.vmem [#allocation3], 256
    %v1423 = vld [vmem:[%s1422] sm:$0xff]
    %v1424 = vld [vmem:[%s1422 + $0x8] sm:$0xff]
    %v1425 = vld [vmem:[%s1422 + $0x10] sm:$0xff]
    %v1426 = vld [vmem:[%s1422 + $0x18] sm:$0xff]
    %v1427 = vld [vmem:[%s1422 + $0x20] sm:$0xff]
    %v1428 = vld [vmem:[%s1422 + $0x28] sm:$0xff]
    %v1429 = vld [vmem:[%s1422 + $0x30] sm:$0xff]
    %v1430 = vld [vmem:[%s1422 + $0x38] sm:$0xff]
    %s1431 = scalar_lea.vmem [#allocation6], 32
    %v1432 = vld [vmem:[%s1431] sm:$0xff]
    %v1434 = vlaneseq
    %v1435 = vshrl.u32 %v1434, 7
    %v1436 = vsub.s32 0, %v1435
    %v1437 = vrot.slane %v1432, %v1436
    %v1438 = vlaneseq
    %v1439 = vshrl.u32 %v1438, 7
    %v1440 = vsub.s32 2, %v1439
    %v1441 = vrot.slane %v1432, %v1440
    %v1442 = vlaneseq
    %v1443 = vshrl.u32 %v1442, 7
    %v1444 = vsub.s32 4, %v1443
    %v1445 = vrot.slane %v1432, %v1444
    %v1446 = vlaneseq
    %v1447 = vshrl.u32 %v1446, 7
    %v1448 = vsub.s32 6, %v1447
    %v1449 = vrot.slane %v1432, %v1448
    %v1454 = vlaneseq
    %v1455 = vshrl.u32 %v1454, 7
    %v1456 = vsub.s32 0, %v1455
    %v1457 = vrot.slane %v1437, %v1456
    %v1458 = vlaneseq
    %v1459 = vshrl.u32 %v1458, 7
    %v1460 = vsub.s32 0, %v1459
    %v1461 = vrot.slane %v1441, %v1460
    %v1462 = vlaneseq
    %v1463 = vshrl.u32 %v1462, 7
    %v1464 = vsub.s32 0, %v1463
    %v1465 = vrot.slane %v1445, %v1464
    %v1466 = vlaneseq
    %v1467 = vshrl.u32 %v1466, 7
    %v1468 = vsub.s32 0, %v1467
    %v1469 = vrot.slane %v1449, %v1468
    %v1478 = vunpack.c.l.b16 %v1423
    %v1479 = vunpack.c.h.b16 %v1423
    %v1480 = vunpack.c.l.b16 %v1424
    %v1481 = vunpack.c.h.b16 %v1424
    %v1482 = vunpack.c.l.b16 %v1425
    %v1483 = vunpack.c.h.b16 %v1425
    %v1484 = vunpack.c.l.b16 %v1426
    %v1485 = vunpack.c.h.b16 %v1426
    %v1486 = vunpack.c.l.b16 %v1427
    %v1487 = vunpack.c.h.b16 %v1427
    %v1488 = vunpack.c.l.b16 %v1428
    %v1489 = vunpack.c.h.b16 %v1428
    %v1490 = vunpack.c.l.b16 %v1429
    %v1491 = vunpack.c.h.b16 %v1429
    %v1492 = vunpack.c.l.b16 %v1430
    %v1493 = vunpack.c.h.b16 %v1430
    %v1494 = vpack.c.b16 %v1482, %v1478
    %v1495 = vpack.c.b16 %v1483, %v1479
    %v1496 = vpack.c.b16 %v1484, %v1480
    %v1497 = vpack.c.b16 %v1485, %v1481
    %v1498 = vpack.c.b16 %v1490, %v1486
    %v1499 = vpack.c.b16 %v1491, %v1487
    %v1500 = vpack.c.b16 %v1492, %v1488
    %v1501 = vpack.c.b16 %v1493, %v1489
    %1510 = vmatprep.subr.bf16.mxu0 0
    %1511 = vmatpush1.bf16.msra.mxu0 0
    %1512 = vmatprep.subr.bf16.mxu0 0
    %1513 = vmatpush1.bf16.msra.mxu0 0
    %1514 = vmatprep.subr.bf16.mxu0 0
    %1515 = vmatpush1.bf16.msra.mxu0 0
    %1516 = vmatprep.subr.bf16.mxu0 0
    %1517 = vmatpush1.bf16.msra.mxu0 0
    %1518 = vmatprep.subr.bf16.mxu0 0
    %1519 = vmatpush1.bf16.msra.mxu0 0
    %1520 = vmatprep.subr.bf16.mxu0 0
    %1521 = vmatpush1.bf16.msra.mxu0 0
    %1522 = vmatprep.subr.bf16.mxu0 %v1499
    %1523 = vmatpush1.bf16.msra.mxu0 %v1498
    %1524 = vmatprep.subr.bf16.mxu0 %v1495
    %1525 = vmatpush1.bf16.msra.mxu0 %v1494
    %1526 = vmatprep.subr.bf16.mxu0 0
    %1527 = vmatpush2.bf16.msra.mxu0 0
    %1528 = vmatprep.subr.bf16.mxu0 0
    %1529 = vmatpush2.bf16.msra.mxu0 0
    %1530 = vmatprep.subr.bf16.mxu0 0
    %1531 = vmatpush2.bf16.msra.mxu0 0
    %1532 = vmatprep.subr.bf16.mxu0 0
    %1533 = vmatpush2.bf16.msra.mxu0 0
    %1534 = vmatprep.subr.bf16.mxu0 0
    %1535 = vmatpush2.bf16.msra.mxu0 0
    %1536 = vmatprep.subr.bf16.mxu0 0
    %1537 = vmatpush2.bf16.msra.mxu0 0
    %1538 = vmatprep.subr.bf16.mxu0 0
    %1539 = vmatpush2.bf16.msra.mxu0 0
    %1540 = vmatprep.subr.bf16.mxu0 0
    %1541 = vmatpush2.bf16.msra.mxu0 0
    %1542 = vmatprep.mubr.bf16.mxu0 0
    %1543 = vmatmul.mubr.bf16.gmra.mxu0 %v138
    %v1544 = vpop.f32.mrf.mxu0
    %v1545 = vadd.f32 %v1457, %v1544
    %v1546 = vpop.f32.mrf.mxu0
    %v1547 = vadd.f32 %v1461, %v1546
    %v1548 = vpop.f32.mrf.mxu0
    %v1549 = vpop.f32.mrf.mxu0
    %1550 = vdwg.mxu0
    %1551 = vmatprep.subr.bf16.mxu0 0
    %1552 = vmatpush1.bf16.msra.mxu0 0
    %1553 = vmatprep.subr.bf16.mxu0 0
    %1554 = vmatpush1.bf16.msra.mxu0 0
    %1555 = vmatprep.subr.bf16.mxu0 0
    %1556 = vmatpush1.bf16.msra.mxu0 0
    %1557 = vmatprep.subr.bf16.mxu0 0
    %1558 = vmatpush1.bf16.msra.mxu0 0
    %1559 = vmatprep.subr.bf16.mxu0 0
    %1560 = vmatpush1.bf16.msra.mxu0 0
    %1561 = vmatprep.subr.bf16.mxu0 0
    %1562 = vmatpush1.bf16.msra.mxu0 0
    %1563 = vmatprep.subr.bf16.mxu0 %v1501
    %1564 = vmatpush1.bf16.msra.mxu0 %v1500
    %1565 = vmatprep.subr.bf16.mxu0 %v1497
    %1566 = vmatpush1.bf16.msra.mxu0 %v1496
    %1567 = vmatprep.subr.bf16.mxu0 0
    %1568 = vmatpush2.bf16.msra.mxu0 0
    %1569 = vmatprep.subr.bf16.mxu0 0
    %1570 = vmatpush2.bf16.msra.mxu0 0
    %1571 = vmatprep.subr.bf16.mxu0 0
    %1572 = vmatpush2.bf16.msra.mxu0 0
    %1573 = vmatprep.subr.bf16.mxu0 0
    %1574 = vmatpush2.bf16.msra.mxu0 0
    %1575 = vmatprep.subr.bf16.mxu0 0
    %1576 = vmatpush2.bf16.msra.mxu0 0
    %1577 = vmatprep.subr.bf16.mxu0 0
    %1578 = vmatpush2.bf16.msra.mxu0 0
    %1579 = vmatprep.subr.bf16.mxu0 0
    %1580 = vmatpush2.bf16.msra.mxu0 0
    %1581 = vmatprep.subr.bf16.mxu0 0
    %1582 = vmatpush2.bf16.msra.mxu0 0
    %1583 = vmatprep.mubr.bf16.mxu0 0
    %1584 = vmatmul.mubr.bf16.gmra.mxu0 %v138
    %v1585 = vpop.f32.mrf.mxu0
    %v1586 = vadd.f32 %v1465, %v1585
    %v1587 = vpop.f32.mrf.mxu0
    %v1588 = vadd.f32 %v1469, %v1587
    %v1589 = vpop.f32.mrf.mxu0
    %v1590 = vpop.f32.mrf.mxu0
    %1591 = vdwg.mxu0
    %vm1592 = vcmp.gt.f32.partialorder %v1545, 0.0
    %vm1593 = vcmp.gt.f32.partialorder %v1547, 0.0
    %vm1594 = vcmp.gt.f32.partialorder %v1586, 0.0
    %vm1595 = vcmp.gt.f32.partialorder %v1588, 0.0
    %v1596 = vmul.f32 %v1545, 0.01
    %v1597 = vmul.f32 %v1547, 0.01
    %v1598 = vmul.f32 %v1586, 0.01
    %v1599 = vmul.f32 %v1588, 0.01
    %v1600 = vsel %vm1592, %v1545, %v1596
    %v1601 = vsel %vm1593, %v1547, %v1597
    %v1602 = vsel %vm1594, %v1586, %v1598
    %v1603 = vsel %vm1595, %v1588, %v1599
    %v1604 = vlaneseq
    %v1605 = vshrl.u32 %v1604, 7
    %v1606 = vsub.s32 1, %v1605
    %v1607 = vrot.slane %v1432, %v1606
    %v1608 = vlaneseq
    %v1609 = vshrl.u32 %v1608, 7
    %v1610 = vsub.s32 3, %v1609
    %v1611 = vrot.slane %v1432, %v1610
    %v1612 = vlaneseq
    %v1613 = vshrl.u32 %v1612, 7
    %v1614 = vsub.s32 5, %v1613
    %v1615 = vrot.slane %v1432, %v1614
    %v1616 = vlaneseq
    %v1617 = vshrl.u32 %v1616, 7
    %v1618 = vsub.s32 7, %v1617
    %v1619 = vrot.slane %v1432, %v1618
    %1624 = vmatprep.subr.mxu0 0.0
    %1625 = vmatpush1.xpose.msra.mxu0 0.0
    %1626 = vmatprep.subr.mxu0 0.0
    %1627 = vmatpush1.xpose.msra.mxu0 0.0
    %1628 = vmatprep.subr.mxu0 0.0
    %1629 = vmatpush1.xpose.msra.mxu0 0.0
    %1630 = vmatprep.subr.mxu0 0.0
    %1631 = vmatpush1.xpose.msra.mxu0 0.0
    %1632 = vmatprep.subr.mxu0 0.0
    %1633 = vmatpush1.xpose.msra.mxu0 0.0
    %1634 = vmatprep.subr.mxu0 0.0
    %1635 = vmatpush1.xpose.msra.mxu0 0.0
    %1636 = vmatprep.subr.mxu0 0.0
    %1637 = vmatpush1.xpose.msra.mxu0 0.0
    %1638 = vmatprep.subr.mxu0 0.0
    %1639 = vmatpush1.xpose.msra.mxu0 0.0
    %1640 = vmatprep.subr.mxu0 0.0
    %1641 = vmatpush1.xpose.msra.mxu0 0.0
    %1642 = vmatprep.subr.mxu0 0.0
    %1643 = vmatpush1.xpose.msra.mxu0 0.0
    %1644 = vmatprep.subr.mxu0 0.0
    %1645 = vmatpush1.xpose.msra.mxu0 0.0
    %1646 = vmatprep.subr.mxu0 0.0
    %1647 = vmatpush1.xpose.msra.mxu0 0.0
    %1648 = vmatprep.subr.mxu0 0.0
    %1649 = vmatpush1.xpose.msra.mxu0 0.0
    %1650 = vmatprep.subr.mxu0 0.0
    %1651 = vmatpush1.xpose.msra.mxu0 0.0
    %1652 = vmatprep.subr.mxu0 0.0
    %1653 = vmatpush1.xpose.msra.mxu0 0.0
    %1654 = vmatprep.subr.mxu0 %v1601
    %1655 = vmatpush1.xpose.msra.mxu0 %v1600
    %1656 = vmatprep.subr.mxu0 0.0
    %1657 = vmatpush2.xpose.msra.mxu0 0.0
    %1658 = vmatprep.subr.mxu0 0.0
    %1659 = vmatpush2.xpose.msra.mxu0 0.0
    %1660 = vmatprep.subr.mxu0 0.0
    %1661 = vmatpush2.xpose.msra.mxu0 0.0
    %1662 = vmatprep.subr.mxu0 0.0
    %1663 = vmatpush2.xpose.msra.mxu0 0.0
    %1664 = vmatprep.subr.mxu0 0.0
    %1665 = vmatpush2.xpose.msra.mxu0 0.0
    %1666 = vmatprep.subr.mxu0 0.0
    %1667 = vmatpush2.xpose.msra.mxu0 0.0
    %1668 = vmatprep.subr.mxu0 0.0
    %1669 = vmatpush2.xpose.msra.mxu0 0.0
    %1670 = vmatprep.subr.mxu0 0.0
    %1671 = vmatpush2.xpose.msra.mxu0 0.0
    %1672 = vmatprep.subr.mxu0 0.0
    %1673 = vmatpush2.xpose.msra.mxu0 0.0
    %1674 = vmatprep.subr.mxu0 0.0
    %1675 = vmatpush2.xpose.msra.mxu0 0.0
    %1676 = vmatprep.subr.mxu0 0.0
    %1677 = vmatpush2.xpose.msra.mxu0 0.0
    %1678 = vmatprep.subr.mxu0 0.0
    %1679 = vmatpush2.xpose.msra.mxu0 0.0
    %1680 = vmatprep.subr.mxu0 0.0
    %1681 = vmatpush2.xpose.msra.mxu0 0.0
    %1682 = vmatprep.subr.mxu0 0.0
    %1683 = vmatpush2.xpose.msra.mxu0 0.0
    %1684 = vmatprep.subr.mxu0 0.0
    %1685 = vmatpush2.xpose.msra.mxu0 0.0
    %1686 = vmatprep.subr.mxu0 0.0
    %1687 = vmatpush2.xpose.msra.mxu0 0.0
    %1688 = vmatprep.mubr.f32.mxu0 %v1611
    %1689 = vmatmul.mubr.f32.gmra.mxu0 %v1607
    %v1690 = vpop.f32.mrf.mxu0
    %v1691 = vadd.f32 0.0, %v1690
    %v1692 = vpop.f32.mrf.mxu0
    %1693 = vdwg.mxu0
    %1694 = vmatprep.subr.mxu0 0.0
    %1695 = vmatpush1.xpose.msra.mxu0 0.0
    %1696 = vmatprep.subr.mxu0 0.0
    %1697 = vmatpush1.xpose.msra.mxu0 0.0
    %1698 = vmatprep.subr.mxu0 0.0
    %1699 = vmatpush1.xpose.msra.mxu0 0.0
    %1700 = vmatprep.subr.mxu0 0.0
    %1701 = vmatpush1.xpose.msra.mxu0 0.0
    %1702 = vmatprep.subr.mxu0 0.0
    %1703 = vmatpush1.xpose.msra.mxu0 0.0
    %1704 = vmatprep.subr.mxu0 0.0
    %1705 = vmatpush1.xpose.msra.mxu0 0.0
    %1706 = vmatprep.subr.mxu0 0.0
    %1707 = vmatpush1.xpose.msra.mxu0 0.0
    %1708 = vmatprep.subr.mxu0 0.0
    %1709 = vmatpush1.xpose.msra.mxu0 0.0
    %1710 = vmatprep.subr.mxu0 0.0
    %1711 = vmatpush1.xpose.msra.mxu0 0.0
    %1712 = vmatprep.subr.mxu0 0.0
    %1713 = vmatpush1.xpose.msra.mxu0 0.0
    %1714 = vmatprep.subr.mxu0 0.0
    %1715 = vmatpush1.xpose.msra.mxu0 0.0
    %1716 = vmatprep.subr.mxu0 0.0
    %1717 = vmatpush1.xpose.msra.mxu0 0.0
    %1718 = vmatprep.subr.mxu0 0.0
    %1719 = vmatpush1.xpose.msra.mxu0 0.0
    %1720 = vmatprep.subr.mxu0 0.0
    %1721 = vmatpush1.xpose.msra.mxu0 0.0
    %1722 = vmatprep.subr.mxu0 0.0
    %1723 = vmatpush1.xpose.msra.mxu0 0.0
    %1724 = vmatprep.subr.mxu0 %v1603
    %1725 = vmatpush1.xpose.msra.mxu0 %v1602
    %1726 = vmatprep.subr.mxu0 0.0
    %1727 = vmatpush2.xpose.msra.mxu0 0.0
    %1728 = vmatprep.subr.mxu0 0.0
    %1729 = vmatpush2.xpose.msra.mxu0 0.0
    %1730 = vmatprep.subr.mxu0 0.0
    %1731 = vmatpush2.xpose.msra.mxu0 0.0
    %1732 = vmatprep.subr.mxu0 0.0
    %1733 = vmatpush2.xpose.msra.mxu0 0.0
    %1734 = vmatprep.subr.mxu0 0.0
    %1735 = vmatpush2.xpose.msra.mxu0 0.0
    %1736 = vmatprep.subr.mxu0 0.0
    %1737 = vmatpush2.xpose.msra.mxu0 0.0
    %1738 = vmatprep.subr.mxu0 0.0
    %1739 = vmatpush2.xpose.msra.mxu0 0.0
    %1740 = vmatprep.subr.mxu0 0.0
    %1741 = vmatpush2.xpose.msra.mxu0 0.0
    %1742 = vmatprep.subr.mxu0 0.0
    %1743 = vmatpush2.xpose.msra.mxu0 0.0
    %1744 = vmatprep.subr.mxu0 0.0
    %1745 = vmatpush2.xpose.msra.mxu0 0.0
    %1746 = vmatprep.subr.mxu0 0.0
    %1747 = vmatpush2.xpose.msra.mxu0 0.0
    %1748 = vmatprep.subr.mxu0 0.0
    %1749 = vmatpush2.xpose.msra.mxu0 0.0
    %1750 = vmatprep.subr.mxu0 0.0
    %1751 = vmatpush2.xpose.msra.mxu0 0.0
    %1752 = vmatprep.subr.mxu0 0.0
    %1753 = vmatpush2.xpose.msra.mxu0 0.0
    %1754 = vmatprep.subr.mxu0 0.0
    %1755 = vmatpush2.xpose.msra.mxu0 0.0
    %1756 = vmatprep.subr.mxu0 0.0
    %1757 = vmatpush2.xpose.msra.mxu0 0.0
    %1758 = vmatprep.mubr.f32.mxu0 %v1619
    %1759 = vmatmul.mubr.f32.gmra.mxu0 %v1615
    %v1760 = vpop.f32.mrf.mxu0
    %v1761 = vadd.f32 %v1691, %v1760
    %v1762 = vpop.f32.mrf.mxu0
    %1763 = vdwg.mxu0
    %v1764 = vadd.f32 %v1421, %v1761
    %s1765 = scalar_lea.vmem [#allocation3], 320
    %v1766 = vld [vmem:[%s1765] sm:$0xff]
    %v1767 = vld [vmem:[%s1765 + $0x8] sm:$0xff]
    %v1768 = vld [vmem:[%s1765 + $0x10] sm:$0xff]
    %v1769 = vld [vmem:[%s1765 + $0x18] sm:$0xff]
    %v1770 = vld [vmem:[%s1765 + $0x20] sm:$0xff]
    %v1771 = vld [vmem:[%s1765 + $0x28] sm:$0xff]
    %v1772 = vld [vmem:[%s1765 + $0x30] sm:$0xff]
    %v1773 = vld [vmem:[%s1765 + $0x38] sm:$0xff]
    %s1774 = scalar_lea.vmem [#allocation6], 40
    %v1775 = vld [vmem:[%s1774] sm:$0xff]
    %v1777 = vlaneseq
    %v1778 = vshrl.u32 %v1777, 7
    %v1779 = vsub.s32 0, %v1778
    %v1780 = vrot.slane %v1775, %v1779
    %v1781 = vlaneseq
    %v1782 = vshrl.u32 %v1781, 7
    %v1783 = vsub.s32 2, %v1782
    %v1784 = vrot.slane %v1775, %v1783
    %v1785 = vlaneseq
    %v1786 = vshrl.u32 %v1785, 7
    %v1787 = vsub.s32 4, %v1786
    %v1788 = vrot.slane %v1775, %v1787
    %v1789 = vlaneseq
    %v1790 = vshrl.u32 %v1789, 7
    %v1791 = vsub.s32 6, %v1790
    %v1792 = vrot.slane %v1775, %v1791
    %v1797 = vlaneseq
    %v1798 = vshrl.u32 %v1797, 7
    %v1799 = vsub.s32 0, %v1798
    %v1800 = vrot.slane %v1780, %v1799
    %v1801 = vlaneseq
    %v1802 = vshrl.u32 %v1801, 7
    %v1803 = vsub.s32 0, %v1802
    %v1804 = vrot.slane %v1784, %v1803
    %v1805 = vlaneseq
    %v1806 = vshrl.u32 %v1805, 7
    %v1807 = vsub.s32 0, %v1806
    %v1808 = vrot.slane %v1788, %v1807
    %v1809 = vlaneseq
    %v1810 = vshrl.u32 %v1809, 7
    %v1811 = vsub.s32 0, %v1810
    %v1812 = vrot.slane %v1792, %v1811
    %v1821 = vunpack.c.l.b16 %v1766
    %v1822 = vunpack.c.h.b16 %v1766
    %v1823 = vunpack.c.l.b16 %v1767
    %v1824 = vunpack.c.h.b16 %v1767
    %v1825 = vunpack.c.l.b16 %v1768
    %v1826 = vunpack.c.h.b16 %v1768
    %v1827 = vunpack.c.l.b16 %v1769
    %v1828 = vunpack.c.h.b16 %v1769
    %v1829 = vunpack.c.l.b16 %v1770
    %v1830 = vunpack.c.h.b16 %v1770
    %v1831 = vunpack.c.l.b16 %v1771
    %v1832 = vunpack.c.h.b16 %v1771
    %v1833 = vunpack.c.l.b16 %v1772
    %v1834 = vunpack.c.h.b16 %v1772
    %v1835 = vunpack.c.l.b16 %v1773
    %v1836 = vunpack.c.h.b16 %v1773
    %v1837 = vpack.c.b16 %v1825, %v1821
    %v1838 = vpack.c.b16 %v1826, %v1822
    %v1839 = vpack.c.b16 %v1827, %v1823
    %v1840 = vpack.c.b16 %v1828, %v1824
    %v1841 = vpack.c.b16 %v1833, %v1829
    %v1842 = vpack.c.b16 %v1834, %v1830
    %v1843 = vpack.c.b16 %v1835, %v1831
    %v1844 = vpack.c.b16 %v1836, %v1832
    %1853 = vmatprep.subr.bf16.mxu0 0
    %1854 = vmatpush1.bf16.msra.mxu0 0
    %1855 = vmatprep.subr.bf16.mxu0 0
    %1856 = vmatpush1.bf16.msra.mxu0 0
    %1857 = vmatprep.subr.bf16.mxu0 0
    %1858 = vmatpush1.bf16.msra.mxu0 0
    %1859 = vmatprep.subr.bf16.mxu0 0
    %1860 = vmatpush1.bf16.msra.mxu0 0
    %1861 = vmatprep.subr.bf16.mxu0 0
    %1862 = vmatpush1.bf16.msra.mxu0 0
    %1863 = vmatprep.subr.bf16.mxu0 0
    %1864 = vmatpush1.bf16.msra.mxu0 0
    %1865 = vmatprep.subr.bf16.mxu0 %v1842
    %1866 = vmatpush1.bf16.msra.mxu0 %v1841
    %1867 = vmatprep.subr.bf16.mxu0 %v1838
    %1868 = vmatpush1.bf16.msra.mxu0 %v1837
    %1869 = vmatprep.subr.bf16.mxu0 0
    %1870 = vmatpush2.bf16.msra.mxu0 0
    %1871 = vmatprep.subr.bf16.mxu0 0
    %1872 = vmatpush2.bf16.msra.mxu0 0
    %1873 = vmatprep.subr.bf16.mxu0 0
    %1874 = vmatpush2.bf16.msra.mxu0 0
    %1875 = vmatprep.subr.bf16.mxu0 0
    %1876 = vmatpush2.bf16.msra.mxu0 0
    %1877 = vmatprep.subr.bf16.mxu0 0
    %1878 = vmatpush2.bf16.msra.mxu0 0
    %1879 = vmatprep.subr.bf16.mxu0 0
    %1880 = vmatpush2.bf16.msra.mxu0 0
    %1881 = vmatprep.subr.bf16.mxu0 0
    %1882 = vmatpush2.bf16.msra.mxu0 0
    %1883 = vmatprep.subr.bf16.mxu0 0
    %1884 = vmatpush2.bf16.msra.mxu0 0
    %1885 = vmatprep.mubr.bf16.mxu0 0
    %1886 = vmatmul.mubr.bf16.gmra.mxu0 %v138
    %v1887 = vpop.f32.mrf.mxu0
    %v1888 = vadd.f32 %v1800, %v1887
    %v1889 = vpop.f32.mrf.mxu0
    %v1890 = vadd.f32 %v1804, %v1889
    %v1891 = vpop.f32.mrf.mxu0
    %v1892 = vpop.f32.mrf.mxu0
    %1893 = vdwg.mxu0
    %1894 = vmatprep.subr.bf16.mxu0 0
    %1895 = vmatpush1.bf16.msra.mxu0 0
    %1896 = vmatprep.subr.bf16.mxu0 0
    %1897 = vmatpush1.bf16.msra.mxu0 0
    %1898 = vmatprep.subr.bf16.mxu0 0
    %1899 = vmatpush1.bf16.msra.mxu0 0
    %1900 = vmatprep.subr.bf16.mxu0 0
    %1901 = vmatpush1.bf16.msra.mxu0 0
    %1902 = vmatprep.subr.bf16.mxu0 0
    %1903 = vmatpush1.bf16.msra.mxu0 0
    %1904 = vmatprep.subr.bf16.mxu0 0
    %1905 = vmatpush1.bf16.msra.mxu0 0
    %1906 = vmatprep.subr.bf16.mxu0 %v1844
    %1907 = vmatpush1.bf16.msra.mxu0 %v1843
    %1908 = vmatprep.subr.bf16.mxu0 %v1840
    %1909 = vmatpush1.bf16.msra.mxu0 %v1839
    %1910 = vmatprep.subr.bf16.mxu0 0
    %1911 = vmatpush2.bf16.msra.mxu0 0
    %1912 = vmatprep.subr.bf16.mxu0 0
    %1913 = vmatpush2.bf16.msra.mxu0 0
    %1914 = vmatprep.subr.bf16.mxu0 0
    %1915 = vmatpush2.bf16.msra.mxu0 0
    %1916 = vmatprep.subr.bf16.mxu0 0
    %1917 = vmatpush2.bf16.msra.mxu0 0
    %1918 = vmatprep.subr.bf16.mxu0 0
    %1919 = vmatpush2.bf16.msra.mxu0 0
    %1920 = vmatprep.subr.bf16.mxu0 0
    %1921 = vmatpush2.bf16.msra.mxu0 0
    %1922 = vmatprep.subr.bf16.mxu0 0
    %1923 = vmatpush2.bf16.msra.mxu0 0
    %1924 = vmatprep.subr.bf16.mxu0 0
    %1925 = vmatpush2.bf16.msra.mxu0 0
    %1926 = vmatprep.mubr.bf16.mxu0 0
    %1927 = vmatmul.mubr.bf16.gmra.mxu0 %v138
    %v1928 = vpop.f32.mrf.mxu0
    %v1929 = vadd.f32 %v1808, %v1928
    %v1930 = vpop.f32.mrf.mxu0
    %v1931 = vadd.f32 %v1812, %v1930
    %v1932 = vpop.f32.mrf.mxu0
    %v1933 = vpop.f32.mrf.mxu0
    %1934 = vdwg.mxu0
    %vm1935 = vcmp.gt.f32.partialorder %v1888, 0.0
    %vm1936 = vcmp.gt.f32.partialorder %v1890, 0.0
    %vm1937 = vcmp.gt.f32.partialorder %v1929, 0.0
    %vm1938 = vcmp.gt.f32.partialorder %v1931, 0.0
    %v1939 = vmul.f32 %v1888, 0.01
    %v1940 = vmul.f32 %v1890, 0.01
    %v1941 = vmul.f32 %v1929, 0.01
    %v1942 = vmul.f32 %v1931, 0.01
    %v1943 = vsel %vm1935, %v1888, %v1939
    %v1944 = vsel %vm1936, %v1890, %v1940
    %v1945 = vsel %vm1937, %v1929, %v1941
    %v1946 = vsel %vm1938, %v1931, %v1942
    %v1947 = vlaneseq
    %v1948 = vshrl.u32 %v1947, 7
    %v1949 = vsub.s32 1, %v1948
    %v1950 = vrot.slane %v1775, %v1949
    %v1951 = vlaneseq
    %v1952 = vshrl.u32 %v1951, 7
    %v1953 = vsub.s32 3, %v1952
    %v1954 = vrot.slane %v1775, %v1953
    %v1955 = vlaneseq
    %v1956 = vshrl.u32 %v1955, 7
    %v1957 = vsub.s32 5, %v1956
    %v1958 = vrot.slane %v1775, %v1957
    %v1959 = vlaneseq
    %v1960 = vshrl.u32 %v1959, 7
    %v1961 = vsub.s32 7, %v1960
    %v1962 = vrot.slane %v1775, %v1961
    %1967 = vmatprep.subr.mxu0 0.0
    %1968 = vmatpush1.xpose.msra.mxu0 0.0
    %1969 = vmatprep.subr.mxu0 0.0
    %1970 = vmatpush1.xpose.msra.mxu0 0.0
    %1971 = vmatprep.subr.mxu0 0.0
    %1972 = vmatpush1.xpose.msra.mxu0 0.0
    %1973 = vmatprep.subr.mxu0 0.0
    %1974 = vmatpush1.xpose.msra.mxu0 0.0
    %1975 = vmatprep.subr.mxu0 0.0
    %1976 = vmatpush1.xpose.msra.mxu0 0.0
    %1977 = vmatprep.subr.mxu0 0.0
    %1978 = vmatpush1.xpose.msra.mxu0 0.0
    %1979 = vmatprep.subr.mxu0 0.0
    %1980 = vmatpush1.xpose.msra.mxu0 0.0
    %1981 = vmatprep.subr.mxu0 0.0
    %1982 = vmatpush1.xpose.msra.mxu0 0.0
    %1983 = vmatprep.subr.mxu0 0.0
    %1984 = vmatpush1.xpose.msra.mxu0 0.0
    %1985 = vmatprep.subr.mxu0 0.0
    %1986 = vmatpush1.xpose.msra.mxu0 0.0
    %1987 = vmatprep.subr.mxu0 0.0
    %1988 = vmatpush1.xpose.msra.mxu0 0.0
    %1989 = vmatprep.subr.mxu0 0.0
    %1990 = vmatpush1.xpose.msra.mxu0 0.0
    %1991 = vmatprep.subr.mxu0 0.0
    %1992 = vmatpush1.xpose.msra.mxu0 0.0
    %1993 = vmatprep.subr.mxu0 0.0
    %1994 = vmatpush1.xpose.msra.mxu0 0.0
    %1995 = vmatprep.subr.mxu0 0.0
    %1996 = vmatpush1.xpose.msra.mxu0 0.0
    %1997 = vmatprep.subr.mxu0 %v1944
    %1998 = vmatpush1.xpose.msra.mxu0 %v1943
    %1999 = vmatprep.subr.mxu0 0.0
    %2000 = vmatpush2.xpose.msra.mxu0 0.0
    %2001 = vmatprep.subr.mxu0 0.0
    %2002 = vmatpush2.xpose.msra.mxu0 0.0
    %2003 = vmatprep.subr.mxu0 0.0
    %2004 = vmatpush2.xpose.msra.mxu0 0.0
    %2005 = vmatprep.subr.mxu0 0.0
    %2006 = vmatpush2.xpose.msra.mxu0 0.0
    %2007 = vmatprep.subr.mxu0 0.0
    %2008 = vmatpush2.xpose.msra.mxu0 0.0
    %2009 = vmatprep.subr.mxu0 0.0
    %2010 = vmatpush2.xpose.msra.mxu0 0.0
    %2011 = vmatprep.subr.mxu0 0.0
    %2012 = vmatpush2.xpose.msra.mxu0 0.0
    %2013 = vmatprep.subr.mxu0 0.0
    %2014 = vmatpush2.xpose.msra.mxu0 0.0
    %2015 = vmatprep.subr.mxu0 0.0
    %2016 = vmatpush2.xpose.msra.mxu0 0.0
    %2017 = vmatprep.subr.mxu0 0.0
    %2018 = vmatpush2.xpose.msra.mxu0 0.0
    %2019 = vmatprep.subr.mxu0 0.0
    %2020 = vmatpush2.xpose.msra.mxu0 0.0
    %2021 = vmatprep.subr.mxu0 0.0
    %2022 = vmatpush2.xpose.msra.mxu0 0.0
    %2023 = vmatprep.subr.mxu0 0.0
    %2024 = vmatpush2.xpose.msra.mxu0 0.0
    %2025 = vmatprep.subr.mxu0 0.0
    %2026 = vmatpush2.xpose.msra.mxu0 0.0
    %2027 = vmatprep.subr.mxu0 0.0
    %2028 = vmatpush2.xpose.msra.mxu0 0.0
    %2029 = vmatprep.subr.mxu0 0.0
    %2030 = vmatpush2.xpose.msra.mxu0 0.0
    %2031 = vmatprep.mubr.f32.mxu0 %v1954
    %2032 = vmatmul.mubr.f32.gmra.mxu0 %v1950
    %v2033 = vpop.f32.mrf.mxu0
    %v2034 = vadd.f32 0.0, %v2033
    %v2035 = vpop.f32.mrf.mxu0
    %2036 = vdwg.mxu0
    %2037 = vmatprep.subr.mxu0 0.0
    %2038 = vmatpush1.xpose.msra.mxu0 0.0
    %2039 = vmatprep.subr.mxu0 0.0
    %2040 = vmatpush1.xpose.msra.mxu0 0.0
    %2041 = vmatprep.subr.mxu0 0.0
    %2042 = vmatpush1.xpose.msra.mxu0 0.0
    %2043 = vmatprep.subr.mxu0 0.0
    %2044 = vmatpush1.xpose.msra.mxu0 0.0
    %2045 = vmatprep.subr.mxu0 0.0
    %2046 = vmatpush1.xpose.msra.mxu0 0.0
    %2047 = vmatprep.subr.mxu0 0.0
    %2048 = vmatpush1.xpose.msra.mxu0 0.0
    %2049 = vmatprep.subr.mxu0 0.0
    %2050 = vmatpush1.xpose.msra.mxu0 0.0
    %2051 = vmatprep.subr.mxu0 0.0
    %2052 = vmatpush1.xpose.msra.mxu0 0.0
    %2053 = vmatprep.subr.mxu0 0.0
    %2054 = vmatpush1.xpose.msra.mxu0 0.0
    %2055 = vmatprep.subr.mxu0 0.0
    %2056 = vmatpush1.xpose.msra.mxu0 0.0
    %2057 = vmatprep.subr.mxu0 0.0
    %2058 = vmatpush1.xpose.msra.mxu0 0.0
    %2059 = vmatprep.subr.mxu0 0.0
    %2060 = vmatpush1.xpose.msra.mxu0 0.0
    %2061 = vmatprep.subr.mxu0 0.0
    %2062 = vmatpush1.xpose.msra.mxu0 0.0
    %2063 = vmatprep.subr.mxu0 0.0
    %2064 = vmatpush1.xpose.msra.mxu0 0.0
    %2065 = vmatprep.subr.mxu0 0.0
    %2066 = vmatpush1.xpose.msra.mxu0 0.0
    %2067 = vmatprep.subr.mxu0 %v1946
    %2068 = vmatpush1.xpose.msra.mxu0 %v1945
    %2069 = vmatprep.subr.mxu0 0.0
    %2070 = vmatpush2.xpose.msra.mxu0 0.0
    %2071 = vmatprep.subr.mxu0 0.0
    %2072 = vmatpush2.xpose.msra.mxu0 0.0
    %2073 = vmatprep.subr.mxu0 0.0
    %2074 = vmatpush2.xpose.msra.mxu0 0.0
    %2075 = vmatprep.subr.mxu0 0.0
    %2076 = vmatpush2.xpose.msra.mxu0 0.0
    %2077 = vmatprep.subr.mxu0 0.0
    %2078 = vmatpush2.xpose.msra.mxu0 0.0
    %2079 = vmatprep.subr.mxu0 0.0
    %2080 = vmatpush2.xpose.msra.mxu0 0.0
    %2081 = vmatprep.subr.mxu0 0.0
    %2082 = vmatpush2.xpose.msra.mxu0 0.0
    %2083 = vmatprep.subr.mxu0 0.0
    %2084 = vmatpush2.xpose.msra.mxu0 0.0
    %2085 = vmatprep.subr.mxu0 0.0
    %2086 = vmatpush2.xpose.msra.mxu0 0.0
    %2087 = vmatprep.subr.mxu0 0.0
    %2088 = vmatpush2.xpose.msra.mxu0 0.0
    %2089 = vmatprep.subr.mxu0 0.0
    %2090 = vmatpush2.xpose.msra.mxu0 0.0
    %2091 = vmatprep.subr.mxu0 0.0
    %2092 = vmatpush2.xpose.msra.mxu0 0.0
    %2093 = vmatprep.subr.mxu0 0.0
    %2094 = vmatpush2.xpose.msra.mxu0 0.0
    %2095 = vmatprep.subr.mxu0 0.0
    %2096 = vmatpush2.xpose.msra.mxu0 0.0
    %2097 = vmatprep.subr.mxu0 0.0
    %2098 = vmatpush2.xpose.msra.mxu0 0.0
    %2099 = vmatprep.subr.mxu0 0.0
    %2100 = vmatpush2.xpose.msra.mxu0 0.0
    %2101 = vmatprep.mubr.f32.mxu0 %v1962
    %2102 = vmatmul.mubr.f32.gmra.mxu0 %v1958
    %v2103 = vpop.f32.mrf.mxu0
    %v2104 = vadd.f32 %v2034, %v2103
    %v2105 = vpop.f32.mrf.mxu0
    %2106 = vdwg.mxu0
    %v2107 = vadd.f32 %v1764, %v2104
    %s2108 = scalar_lea.vmem [#allocation3], 384
    %v2109 = vld [vmem:[%s2108] sm:$0xff]
    %v2110 = vld [vmem:[%s2108 + $0x8] sm:$0xff]
    %v2111 = vld [vmem:[%s2108 + $0x10] sm:$0xff]
    %v2112 = vld [vmem:[%s2108 + $0x18] sm:$0xff]
    %v2113 = vld [vmem:[%s2108 + $0x20] sm:$0xff]
    %v2114 = vld [vmem:[%s2108 + $0x28] sm:$0xff]
    %v2115 = vld [vmem:[%s2108 + $0x30] sm:$0xff]
    %v2116 = vld [vmem:[%s2108 + $0x38] sm:$0xff]
    %s2117 = scalar_lea.vmem [#allocation6], 48
    %v2118 = vld [vmem:[%s2117] sm:$0xff]
    %v2120 = vlaneseq
    %v2121 = vshrl.u32 %v2120, 7
    %v2122 = vsub.s32 0, %v2121
    %v2123 = vrot.slane %v2118, %v2122
    %v2124 = vlaneseq
    %v2125 = vshrl.u32 %v2124, 7
    %v2126 = vsub.s32 2, %v2125
    %v2127 = vrot.slane %v2118, %v2126
    %v2128 = vlaneseq
    %v2129 = vshrl.u32 %v2128, 7
    %v2130 = vsub.s32 4, %v2129
    %v2131 = vrot.slane %v2118, %v2130
    %v2132 = vlaneseq
    %v2133 = vshrl.u32 %v2132, 7
    %v2134 = vsub.s32 6, %v2133
    %v2135 = vrot.slane %v2118, %v2134
    %v2140 = vlaneseq
    %v2141 = vshrl.u32 %v2140, 7
    %v2142 = vsub.s32 0, %v2141
    %v2143 = vrot.slane %v2123, %v2142
    %v2144 = vlaneseq
    %v2145 = vshrl.u32 %v2144, 7
    %v2146 = vsub.s32 0, %v2145
    %v2147 = vrot.slane %v2127, %v2146
    %v2148 = vlaneseq
    %v2149 = vshrl.u32 %v2148, 7
    %v2150 = vsub.s32 0, %v2149
    %v2151 = vrot.slane %v2131, %v2150
    %v2152 = vlaneseq
    %v2153 = vshrl.u32 %v2152, 7
    %v2154 = vsub.s32 0, %v2153
    %v2155 = vrot.slane %v2135, %v2154
    %v2164 = vunpack.c.l.b16 %v2109
    %v2165 = vunpack.c.h.b16 %v2109
    %v2166 = vunpack.c.l.b16 %v2110
    %v2167 = vunpack.c.h.b16 %v2110
    %v2168 = vunpack.c.l.b16 %v2111
    %v2169 = vunpack.c.h.b16 %v2111
    %v2170 = vunpack.c.l.b16 %v2112
    %v2171 = vunpack.c.h.b16 %v2112
    %v2172 = vunpack.c.l.b16 %v2113
    %v2173 = vunpack.c.h.b16 %v2113
    %v2174 = vunpack.c.l.b16 %v2114
    %v2175 = vunpack.c.h.b16 %v2114
    %v2176 = vunpack.c.l.b16 %v2115
    %v2177 = vunpack.c.h.b16 %v2115
    %v2178 = vunpack.c.l.b16 %v2116
    %v2179 = vunpack.c.h.b16 %v2116
    %v2180 = vpack.c.b16 %v2168, %v2164
    %v2181 = vpack.c.b16 %v2169, %v2165
    %v2182 = vpack.c.b16 %v2170, %v2166
    %v2183 = vpack.c.b16 %v2171, %v2167
    %v2184 = vpack.c.b16 %v2176, %v2172
    %v2185 = vpack.c.b16 %v2177, %v2173
    %v2186 = vpack.c.b16 %v2178, %v2174
    %v2187 = vpack.c.b16 %v2179, %v2175
    %2196 = vmatprep.subr.bf16.mxu0 0
    %2197 = vmatpush1.bf16.msra.mxu0 0
    %2198 = vmatprep.subr.bf16.mxu0 0
    %2199 = vmatpush1.bf16.msra.mxu0 0
    %2200 = vmatprep.subr.bf16.mxu0 0
    %2201 = vmatpush1.bf16.msra.mxu0 0
    %2202 = vmatprep.subr.bf16.mxu0 0
    %2203 = vmatpush1.bf16.msra.mxu0 0
    %2204 = vmatprep.subr.bf16.mxu0 0
    %2205 = vmatpush1.bf16.msra.mxu0 0
    %2206 = vmatprep.subr.bf16.mxu0 0
    %2207 = vmatpush1.bf16.msra.mxu0 0
    %2208 = vmatprep.subr.bf16.mxu0 %v2185
    %2209 = vmatpush1.bf16.msra.mxu0 %v2184
    %2210 = vmatprep.subr.bf16.mxu0 %v2181
    %2211 = vmatpush1.bf16.msra.mxu0 %v2180
    %2212 = vmatprep.subr.bf16.mxu0 0
    %2213 = vmatpush2.bf16.msra.mxu0 0
    %2214 = vmatprep.subr.bf16.mxu0 0
    %2215 = vmatpush2.bf16.msra.mxu0 0
    %2216 = vmatprep.subr.bf16.mxu0 0
    %2217 = vmatpush2.bf16.msra.mxu0 0
    %2218 = vmatprep.subr.bf16.mxu0 0
    %2219 = vmatpush2.bf16.msra.mxu0 0
    %2220 = vmatprep.subr.bf16.mxu0 0
    %2221 = vmatpush2.bf16.msra.mxu0 0
    %2222 = vmatprep.subr.bf16.mxu0 0
    %2223 = vmatpush2.bf16.msra.mxu0 0
    %2224 = vmatprep.subr.bf16.mxu0 0
    %2225 = vmatpush2.bf16.msra.mxu0 0
    %2226 = vmatprep.subr.bf16.mxu0 0
    %2227 = vmatpush2.bf16.msra.mxu0 0
    %2228 = vmatprep.mubr.bf16.mxu0 0
    %2229 = vmatmul.mubr.bf16.gmra.mxu0 %v138
    %v2230 = vpop.f32.mrf.mxu0
    %v2231 = vadd.f32 %v2143, %v2230
    %v2232 = vpop.f32.mrf.mxu0
    %v2233 = vadd.f32 %v2147, %v2232
    %v2234 = vpop.f32.mrf.mxu0
    %v2235 = vpop.f32.mrf.mxu0
    %2236 = vdwg.mxu0
    %2237 = vmatprep.subr.bf16.mxu0 0
    %2238 = vmatpush1.bf16.msra.mxu0 0
    %2239 = vmatprep.subr.bf16.mxu0 0
    %2240 = vmatpush1.bf16.msra.mxu0 0
    %2241 = vmatprep.subr.bf16.mxu0 0
    %2242 = vmatpush1.bf16.msra.mxu0 0
    %2243 = vmatprep.subr.bf16.mxu0 0
    %2244 = vmatpush1.bf16.msra.mxu0 0
    %2245 = vmatprep.subr.bf16.mxu0 0
    %2246 = vmatpush1.bf16.msra.mxu0 0
    %2247 = vmatprep.subr.bf16.mxu0 0
    %2248 = vmatpush1.bf16.msra.mxu0 0
    %2249 = vmatprep.subr.bf16.mxu0 %v2187
    %2250 = vmatpush1.bf16.msra.mxu0 %v2186
    %2251 = vmatprep.subr.bf16.mxu0 %v2183
    %2252 = vmatpush1.bf16.msra.mxu0 %v2182
    %2253 = vmatprep.subr.bf16.mxu0 0
    %2254 = vmatpush2.bf16.msra.mxu0 0
    %2255 = vmatprep.subr.bf16.mxu0 0
    %2256 = vmatpush2.bf16.msra.mxu0 0
    %2257 = vmatprep.subr.bf16.mxu0 0
    %2258 = vmatpush2.bf16.msra.mxu0 0
    %2259 = vmatprep.subr.bf16.mxu0 0
    %2260 = vmatpush2.bf16.msra.mxu0 0
    %2261 = vmatprep.subr.bf16.mxu0 0
    %2262 = vmatpush2.bf16.msra.mxu0 0
    %2263 = vmatprep.subr.bf16.mxu0 0
    %2264 = vmatpush2.bf16.msra.mxu0 0
    %2265 = vmatprep.subr.bf16.mxu0 0
    %2266 = vmatpush2.bf16.msra.mxu0 0
    %2267 = vmatprep.subr.bf16.mxu0 0
    %2268 = vmatpush2.bf16.msra.mxu0 0
    %2269 = vmatprep.mubr.bf16.mxu0 0
    %2270 = vmatmul.mubr.bf16.gmra.mxu0 %v138
    %v2271 = vpop.f32.mrf.mxu0
    %v2272 = vadd.f32 %v2151, %v2271
    %v2273 = vpop.f32.mrf.mxu0
    %v2274 = vadd.f32 %v2155, %v2273
    %v2275 = vpop.f32.mrf.mxu0
    %v2276 = vpop.f32.mrf.mxu0
    %2277 = vdwg.mxu0
    %vm2278 = vcmp.gt.f32.partialorder %v2231, 0.0
    %vm2279 = vcmp.gt.f32.partialorder %v2233, 0.0
    %vm2280 = vcmp.gt.f32.partialorder %v2272, 0.0
    %vm2281 = vcmp.gt.f32.partialorder %v2274, 0.0
    %v2282 = vmul.f32 %v2231, 0.01
    %v2283 = vmul.f32 %v2233, 0.01
    %v2284 = vmul.f32 %v2272, 0.01
    %v2285 = vmul.f32 %v2274, 0.01
    %v2286 = vsel %vm2278, %v2231, %v2282
    %v2287 = vsel %vm2279, %v2233, %v2283
    %v2288 = vsel %vm2280, %v2272, %v2284
    %v2289 = vsel %vm2281, %v2274, %v2285
    %v2290 = vlaneseq
    %v2291 = vshrl.u32 %v2290, 7
    %v2292 = vsub.s32 1, %v2291
    %v2293 = vrot.slane %v2118, %v2292
    %v2294 = vlaneseq
    %v2295 = vshrl.u32 %v2294, 7
    %v2296 = vsub.s32 3, %v2295
    %v2297 = vrot.slane %v2118, %v2296
    %v2298 = vlaneseq
    %v2299 = vshrl.u32 %v2298, 7
    %v2300 = vsub.s32 5, %v2299
    %v2301 = vrot.slane %v2118, %v2300
    %v2302 = vlaneseq
    %v2303 = vshrl.u32 %v2302, 7
    %v2304 = vsub.s32 7, %v2303
    %v2305 = vrot.slane %v2118, %v2304
    %2310 = vmatprep.subr.mxu0 0.0
    %2311 = vmatpush1.xpose.msra.mxu0 0.0
    %2312 = vmatprep.subr.mxu0 0.0
    %2313 = vmatpush1.xpose.msra.mxu0 0.0
    %2314 = vmatprep.subr.mxu0 0.0
    %2315 = vmatpush1.xpose.msra.mxu0 0.0
    %2316 = vmatprep.subr.mxu0 0.0
    %2317 = vmatpush1.xpose.msra.mxu0 0.0
    %2318 = vmatprep.subr.mxu0 0.0
    %2319 = vmatpush1.xpose.msra.mxu0 0.0
    %2320 = vmatprep.subr.mxu0 0.0
    %2321 = vmatpush1.xpose.msra.mxu0 0.0
    %2322 = vmatprep.subr.mxu0 0.0
    %2323 = vmatpush1.xpose.msra.mxu0 0.0
    %2324 = vmatprep.subr.mxu0 0.0
    %2325 = vmatpush1.xpose.msra.mxu0 0.0
    %2326 = vmatprep.subr.mxu0 0.0
    %2327 = vmatpush1.xpose.msra.mxu0 0.0
    %2328 = vmatprep.subr.mxu0 0.0
    %2329 = vmatpush1.xpose.msra.mxu0 0.0
    %2330 = vmatprep.subr.mxu0 0.0
    %2331 = vmatpush1.xpose.msra.mxu0 0.0
    %2332 = vmatprep.subr.mxu0 0.0
    %2333 = vmatpush1.xpose.msra.mxu0 0.0
    %2334 = vmatprep.subr.mxu0 0.0
    %2335 = vmatpush1.xpose.msra.mxu0 0.0
    %2336 = vmatprep.subr.mxu0 0.0
    %2337 = vmatpush1.xpose.msra.mxu0 0.0
    %2338 = vmatprep.subr.mxu0 0.0
    %2339 = vmatpush1.xpose.msra.mxu0 0.0
    %2340 = vmatprep.subr.mxu0 %v2287
    %2341 = vmatpush1.xpose.msra.mxu0 %v2286
    %2342 = vmatprep.subr.mxu0 0.0
    %2343 = vmatpush2.xpose.msra.mxu0 0.0
    %2344 = vmatprep.subr.mxu0 0.0
    %2345 = vmatpush2.xpose.msra.mxu0 0.0
    %2346 = vmatprep.subr.mxu0 0.0
    %2347 = vmatpush2.xpose.msra.mxu0 0.0
    %2348 = vmatprep.subr.mxu0 0.0
    %2349 = vmatpush2.xpose.msra.mxu0 0.0
    %2350 = vmatprep.subr.mxu0 0.0
    %2351 = vmatpush2.xpose.msra.mxu0 0.0
    %2352 = vmatprep.subr.mxu0 0.0
    %2353 = vmatpush2.xpose.msra.mxu0 0.0
    %2354 = vmatprep.subr.mxu0 0.0
    %2355 = vmatpush2.xpose.msra.mxu0 0.0
    %2356 = vmatprep.subr.mxu0 0.0
    %2357 = vmatpush2.xpose.msra.mxu0 0.0
    %2358 = vmatprep.subr.mxu0 0.0
    %2359 = vmatpush2.xpose.msra.mxu0 0.0
    %2360 = vmatprep.subr.mxu0 0.0
    %2361 = vmatpush2.xpose.msra.mxu0 0.0
    %2362 = vmatprep.subr.mxu0 0.0
    %2363 = vmatpush2.xpose.msra.mxu0 0.0
    %2364 = vmatprep.subr.mxu0 0.0
    %2365 = vmatpush2.xpose.msra.mxu0 0.0
    %2366 = vmatprep.subr.mxu0 0.0
    %2367 = vmatpush2.xpose.msra.mxu0 0.0
    %2368 = vmatprep.subr.mxu0 0.0
    %2369 = vmatpush2.xpose.msra.mxu0 0.0
    %2370 = vmatprep.subr.mxu0 0.0
    %2371 = vmatpush2.xpose.msra.mxu0 0.0
    %2372 = vmatprep.subr.mxu0 0.0
    %2373 = vmatpush2.xpose.msra.mxu0 0.0
    %2374 = vmatprep.mubr.f32.mxu0 %v2297
    %2375 = vmatmul.mubr.f32.gmra.mxu0 %v2293
    %v2376 = vpop.f32.mrf.mxu0
    %v2377 = vadd.f32 0.0, %v2376
    %v2378 = vpop.f32.mrf.mxu0
    %2379 = vdwg.mxu0
    %2380 = vmatprep.subr.mxu0 0.0
    %2381 = vmatpush1.xpose.msra.mxu0 0.0
    %2382 = vmatprep.subr.mxu0 0.0
    %2383 = vmatpush1.xpose.msra.mxu0 0.0
    %2384 = vmatprep.subr.mxu0 0.0
    %2385 = vmatpush1.xpose.msra.mxu0 0.0
    %2386 = vmatprep.subr.mxu0 0.0
    %2387 = vmatpush1.xpose.msra.mxu0 0.0
    %2388 = vmatprep.subr.mxu0 0.0
    %2389 = vmatpush1.xpose.msra.mxu0 0.0
    %2390 = vmatprep.subr.mxu0 0.0
    %2391 = vmatpush1.xpose.msra.mxu0 0.0
    %2392 = vmatprep.subr.mxu0 0.0
    %2393 = vmatpush1.xpose.msra.mxu0 0.0
    %2394 = vmatprep.subr.mxu0 0.0
    %2395 = vmatpush1.xpose.msra.mxu0 0.0
    %2396 = vmatprep.subr.mxu0 0.0
    %2397 = vmatpush1.xpose.msra.mxu0 0.0
    %2398 = vmatprep.subr.mxu0 0.0
    %2399 = vmatpush1.xpose.msra.mxu0 0.0
    %2400 = vmatprep.subr.mxu0 0.0
    %2401 = vmatpush1.xpose.msra.mxu0 0.0
    %2402 = vmatprep.subr.mxu0 0.0
    %2403 = vmatpush1.xpose.msra.mxu0 0.0
    %2404 = vmatprep.subr.mxu0 0.0
    %2405 = vmatpush1.xpose.msra.mxu0 0.0
    %2406 = vmatprep.subr.mxu0 0.0
    %2407 = vmatpush1.xpose.msra.mxu0 0.0
    %2408 = vmatprep.subr.mxu0 0.0
    %2409 = vmatpush1.xpose.msra.mxu0 0.0
    %2410 = vmatprep.subr.mxu0 %v2289
    %2411 = vmatpush1.xpose.msra.mxu0 %v2288
    %2412 = vmatprep.subr.mxu0 0.0
    %2413 = vmatpush2.xpose.msra.mxu0 0.0
    %2414 = vmatprep.subr.mxu0 0.0
    %2415 = vmatpush2.xpose.msra.mxu0 0.0
    %2416 = vmatprep.subr.mxu0 0.0
    %2417 = vmatpush2.xpose.msra.mxu0 0.0
    %2418 = vmatprep.subr.mxu0 0.0
    %2419 = vmatpush2.xpose.msra.mxu0 0.0
    %2420 = vmatprep.subr.mxu0 0.0
    %2421 = vmatpush2.xpose.msra.mxu0 0.0
    %2422 = vmatprep.subr.mxu0 0.0
    %2423 = vmatpush2.xpose.msra.mxu0 0.0
    %2424 = vmatprep.subr.mxu0 0.0
    %2425 = vmatpush2.xpose.msra.mxu0 0.0
    %2426 = vmatprep.subr.mxu0 0.0
    %2427 = vmatpush2.xpose.msra.mxu0 0.0
    %2428 = vmatprep.subr.mxu0 0.0
    %2429 = vmatpush2.xpose.msra.mxu0 0.0
    %2430 = vmatprep.subr.mxu0 0.0
    %2431 = vmatpush2.xpose.msra.mxu0 0.0
    %2432 = vmatprep.subr.mxu0 0.0
    %2433 = vmatpush2.xpose.msra.mxu0 0.0
    %2434 = vmatprep.subr.mxu0 0.0
    %2435 = vmatpush2.xpose.msra.mxu0 0.0
    %2436 = vmatprep.subr.mxu0 0.0
    %2437 = vmatpush2.xpose.msra.mxu0 0.0
    %2438 = vmatprep.subr.mxu0 0.0
    %2439 = vmatpush2.xpose.msra.mxu0 0.0
    %2440 = vmatprep.subr.mxu0 0.0
    %2441 = vmatpush2.xpose.msra.mxu0 0.0
    %2442 = vmatprep.subr.mxu0 0.0
    %2443 = vmatpush2.xpose.msra.mxu0 0.0
    %2444 = vmatprep.mubr.f32.mxu0 %v2305
    %2445 = vmatmul.mubr.f32.gmra.mxu0 %v2301
    %v2446 = vpop.f32.mrf.mxu0
    %v2447 = vadd.f32 %v2377, %v2446
    %v2448 = vpop.f32.mrf.mxu0
    %2449 = vdwg.mxu0
    %v2450 = vadd.f32 %v2107, %v2447
    %s2451 = scalar_lea.vmem [#allocation3], 448
    %v2452 = vld [vmem:[%s2451] sm:$0xff]
    %v2453 = vld [vmem:[%s2451 + $0x8] sm:$0xff]
    %v2454 = vld [vmem:[%s2451 + $0x10] sm:$0xff]
    %v2455 = vld [vmem:[%s2451 + $0x18] sm:$0xff]
    %v2456 = vld [vmem:[%s2451 + $0x20] sm:$0xff]
    %v2457 = vld [vmem:[%s2451 + $0x28] sm:$0xff]
    %v2458 = vld [vmem:[%s2451 + $0x30] sm:$0xff]
    %v2459 = vld [vmem:[%s2451 + $0x38] sm:$0xff]
    %s2460 = scalar_lea.vmem [#allocation6], 56
    %v2461 = vld [vmem:[%s2460] sm:$0xff]
    %v2463 = vlaneseq
    %v2464 = vshrl.u32 %v2463, 7
    %v2465 = vsub.s32 0, %v2464
    %v2466 = vrot.slane %v2461, %v2465
    %v2467 = vlaneseq
    %v2468 = vshrl.u32 %v2467, 7
    %v2469 = vsub.s32 2, %v2468
    %v2470 = vrot.slane %v2461, %v2469
    %v2471 = vlaneseq
    %v2472 = vshrl.u32 %v2471, 7
    %v2473 = vsub.s32 4, %v2472
    %v2474 = vrot.slane %v2461, %v2473
    %v2475 = vlaneseq
    %v2476 = vshrl.u32 %v2475, 7
    %v2477 = vsub.s32 6, %v2476
    %v2478 = vrot.slane %v2461, %v2477
    %v2483 = vlaneseq
    %v2484 = vshrl.u32 %v2483, 7
    %v2485 = vsub.s32 0, %v2484
    %v2486 = vrot.slane %v2466, %v2485
    %v2487 = vlaneseq
    %v2488 = vshrl.u32 %v2487, 7
    %v2489 = vsub.s32 0, %v2488
    %v2490 = vrot.slane %v2470, %v2489
    %v2491 = vlaneseq
    %v2492 = vshrl.u32 %v2491, 7
    %v2493 = vsub.s32 0, %v2492
    %v2494 = vrot.slane %v2474, %v2493
    %v2495 = vlaneseq
    %v2496 = vshrl.u32 %v2495, 7
    %v2497 = vsub.s32 0, %v2496
    %v2498 = vrot.slane %v2478, %v2497
    %v2507 = vunpack.c.l.b16 %v2452
    %v2508 = vunpack.c.h.b16 %v2452
    %v2509 = vunpack.c.l.b16 %v2453
    %v2510 = vunpack.c.h.b16 %v2453
    %v2511 = vunpack.c.l.b16 %v2454
    %v2512 = vunpack.c.h.b16 %v2454
    %v2513 = vunpack.c.l.b16 %v2455
    %v2514 = vunpack.c.h.b16 %v2455
    %v2515 = vunpack.c.l.b16 %v2456
    %v2516 = vunpack.c.h.b16 %v2456
    %v2517 = vunpack.c.l.b16 %v2457
    %v2518 = vunpack.c.h.b16 %v2457
    %v2519 = vunpack.c.l.b16 %v2458
    %v2520 = vunpack.c.h.b16 %v2458
    %v2521 = vunpack.c.l.b16 %v2459
    %v2522 = vunpack.c.h.b16 %v2459
    %v2523 = vpack.c.b16 %v2511, %v2507
    %v2524 = vpack.c.b16 %v2512, %v2508
    %v2525 = vpack.c.b16 %v2513, %v2509
    %v2526 = vpack.c.b16 %v2514, %v2510
    %v2527 = vpack.c.b16 %v2519, %v2515
    %v2528 = vpack.c.b16 %v2520, %v2516
    %v2529 = vpack.c.b16 %v2521, %v2517
    %v2530 = vpack.c.b16 %v2522, %v2518
    %2539 = vmatprep.subr.bf16.mxu0 0
    %2540 = vmatpush1.bf16.msra.mxu0 0
    %2541 = vmatprep.subr.bf16.mxu0 0
    %2542 = vmatpush1.bf16.msra.mxu0 0
    %2543 = vmatprep.subr.bf16.mxu0 0
    %2544 = vmatpush1.bf16.msra.mxu0 0
    %2545 = vmatprep.subr.bf16.mxu0 0
    %2546 = vmatpush1.bf16.msra.mxu0 0
    %2547 = vmatprep.subr.bf16.mxu0 0
    %2548 = vmatpush1.bf16.msra.mxu0 0
    %2549 = vmatprep.subr.bf16.mxu0 0
    %2550 = vmatpush1.bf16.msra.mxu0 0
    %2551 = vmatprep.subr.bf16.mxu0 %v2528
    %2552 = vmatpush1.bf16.msra.mxu0 %v2527
    %2553 = vmatprep.subr.bf16.mxu0 %v2524
    %2554 = vmatpush1.bf16.msra.mxu0 %v2523
    %2555 = vmatprep.subr.bf16.mxu0 0
    %2556 = vmatpush2.bf16.msra.mxu0 0
    %2557 = vmatprep.subr.bf16.mxu0 0
    %2558 = vmatpush2.bf16.msra.mxu0 0
    %2559 = vmatprep.subr.bf16.mxu0 0
    %2560 = vmatpush2.bf16.msra.mxu0 0
    %2561 = vmatprep.subr.bf16.mxu0 0
    %2562 = vmatpush2.bf16.msra.mxu0 0
    %2563 = vmatprep.subr.bf16.mxu0 0
    %2564 = vmatpush2.bf16.msra.mxu0 0
    %2565 = vmatprep.subr.bf16.mxu0 0
    %2566 = vmatpush2.bf16.msra.mxu0 0
    %2567 = vmatprep.subr.bf16.mxu0 0
    %2568 = vmatpush2.bf16.msra.mxu0 0
    %2569 = vmatprep.subr.bf16.mxu0 0
    %2570 = vmatpush2.bf16.msra.mxu0 0
    %2571 = vmatprep.mubr.bf16.mxu0 0
    %2572 = vmatmul.mubr.bf16.gmra.mxu0 %v138
    %v2573 = vpop.f32.mrf.mxu0
    %v2574 = vadd.f32 %v2486, %v2573
    %v2575 = vpop.f32.mrf.mxu0
    %v2576 = vadd.f32 %v2490, %v2575
    %v2577 = vpop.f32.mrf.mxu0
    %v2578 = vpop.f32.mrf.mxu0
    %2579 = vdwg.mxu0
    %2580 = vmatprep.subr.bf16.mxu0 0
    %2581 = vmatpush1.bf16.msra.mxu0 0
    %2582 = vmatprep.subr.bf16.mxu0 0
    %2583 = vmatpush1.bf16.msra.mxu0 0
    %2584 = vmatprep.subr.bf16.mxu0 0
    %2585 = vmatpush1.bf16.msra.mxu0 0
    %2586 = vmatprep.subr.bf16.mxu0 0
    %2587 = vmatpush1.bf16.msra.mxu0 0
    %2588 = vmatprep.subr.bf16.mxu0 0
    %2589 = vmatpush1.bf16.msra.mxu0 0
    %2590 = vmatprep.subr.bf16.mxu0 0
    %2591 = vmatpush1.bf16.msra.mxu0 0
    %2592 = vmatprep.subr.bf16.mxu0 %v2530
    %2593 = vmatpush1.bf16.msra.mxu0 %v2529
    %2594 = vmatprep.subr.bf16.mxu0 %v2526
    %2595 = vmatpush1.bf16.msra.mxu0 %v2525
    %2596 = vmatprep.subr.bf16.mxu0 0
    %2597 = vmatpush2.bf16.msra.mxu0 0
    %2598 = vmatprep.subr.bf16.mxu0 0
    %2599 = vmatpush2.bf16.msra.mxu0 0
    %2600 = vmatprep.subr.bf16.mxu0 0
    %2601 = vmatpush2.bf16.msra.mxu0 0
    %2602 = vmatprep.subr.bf16.mxu0 0
    %2603 = vmatpush2.bf16.msra.mxu0 0
    %2604 = vmatprep.subr.bf16.mxu0 0
    %2605 = vmatpush2.bf16.msra.mxu0 0
    %2606 = vmatprep.subr.bf16.mxu0 0
    %2607 = vmatpush2.bf16.msra.mxu0 0
    %2608 = vmatprep.subr.bf16.mxu0 0
    %2609 = vmatpush2.bf16.msra.mxu0 0
    %2610 = vmatprep.subr.bf16.mxu0 0
    %2611 = vmatpush2.bf16.msra.mxu0 0
    %2612 = vmatprep.mubr.bf16.mxu0 0
    %2613 = vmatmul.mubr.bf16.gmra.mxu0 %v138
    %v2614 = vpop.f32.mrf.mxu0
    %v2615 = vadd.f32 %v2494, %v2614
    %v2616 = vpop.f32.mrf.mxu0
    %v2617 = vadd.f32 %v2498, %v2616
    %v2618 = vpop.f32.mrf.mxu0
    %v2619 = vpop.f32.mrf.mxu0
    %2620 = vdwg.mxu0
    %vm2621 = vcmp.gt.f32.partialorder %v2574, 0.0
    %vm2622 = vcmp.gt.f32.partialorder %v2576, 0.0
    %vm2623 = vcmp.gt.f32.partialorder %v2615, 0.0
    %vm2624 = vcmp.gt.f32.partialorder %v2617, 0.0
    %v2625 = vmul.f32 %v2574, 0.01
    %v2626 = vmul.f32 %v2576, 0.01
    %v2627 = vmul.f32 %v2615, 0.01
    %v2628 = vmul.f32 %v2617, 0.01
    %v2629 = vsel %vm2621, %v2574, %v2625
    %v2630 = vsel %vm2622, %v2576, %v2626
    %v2631 = vsel %vm2623, %v2615, %v2627
    %v2632 = vsel %vm2624, %v2617, %v2628
    %v2633 = vlaneseq
    %v2634 = vshrl.u32 %v2633, 7
    %v2635 = vsub.s32 1, %v2634
    %v2636 = vrot.slane %v2461, %v2635
    %v2637 = vlaneseq
    %v2638 = vshrl.u32 %v2637, 7
    %v2639 = vsub.s32 3, %v2638
    %v2640 = vrot.slane %v2461, %v2639
    %v2641 = vlaneseq
    %v2642 = vshrl.u32 %v2641, 7
    %v2643 = vsub.s32 5, %v2642
    %v2644 = vrot.slane %v2461, %v2643
    %v2645 = vlaneseq
    %v2646 = vshrl.u32 %v2645, 7
    %v2647 = vsub.s32 7, %v2646
    %v2648 = vrot.slane %v2461, %v2647
    %2653 = vmatprep.subr.mxu0 0.0
    %2654 = vmatpush1.xpose.msra.mxu0 0.0
    %2655 = vmatprep.subr.mxu0 0.0
    %2656 = vmatpush1.xpose.msra.mxu0 0.0
    %2657 = vmatprep.subr.mxu0 0.0
    %2658 = vmatpush1.xpose.msra.mxu0 0.0
    %2659 = vmatprep.subr.mxu0 0.0
    %2660 = vmatpush1.xpose.msra.mxu0 0.0
    %2661 = vmatprep.subr.mxu0 0.0
    %2662 = vmatpush1.xpose.msra.mxu0 0.0
    %2663 = vmatprep.subr.mxu0 0.0
    %2664 = vmatpush1.xpose.msra.mxu0 0.0
    %2665 = vmatprep.subr.mxu0 0.0
    %2666 = vmatpush1.xpose.msra.mxu0 0.0
    %2667 = vmatprep.subr.mxu0 0.0
    %2668 = vmatpush1.xpose.msra.mxu0 0.0
    %2669 = vmatprep.subr.mxu0 0.0
    %2670 = vmatpush1.xpose.msra.mxu0 0.0
    %2671 = vmatprep.subr.mxu0 0.0
    %2672 = vmatpush1.xpose.msra.mxu0 0.0
    %2673 = vmatprep.subr.mxu0 0.0
    %2674 = vmatpush1.xpose.msra.mxu0 0.0
    %2675 = vmatprep.subr.mxu0 0.0
    %2676 = vmatpush1.xpose.msra.mxu0 0.0
    %2677 = vmatprep.subr.mxu0 0.0
    %2678 = vmatpush1.xpose.msra.mxu0 0.0
    %2679 = vmatprep.subr.mxu0 0.0
    %2680 = vmatpush1.xpose.msra.mxu0 0.0
    %2681 = vmatprep.subr.mxu0 0.0
    %2682 = vmatpush1.xpose.msra.mxu0 0.0
    %2683 = vmatprep.subr.mxu0 %v2630
    %2684 = vmatpush1.xpose.msra.mxu0 %v2629
    %2685 = vmatprep.subr.mxu0 0.0
    %2686 = vmatpush2.xpose.msra.mxu0 0.0
    %2687 = vmatprep.subr.mxu0 0.0
    %2688 = vmatpush2.xpose.msra.mxu0 0.0
    %2689 = vmatprep.subr.mxu0 0.0
    %2690 = vmatpush2.xpose.msra.mxu0 0.0
    %2691 = vmatprep.subr.mxu0 0.0
    %2692 = vmatpush2.xpose.msra.mxu0 0.0
    %2693 = vmatprep.subr.mxu0 0.0
    %2694 = vmatpush2.xpose.msra.mxu0 0.0
    %2695 = vmatprep.subr.mxu0 0.0
    %2696 = vmatpush2.xpose.msra.mxu0 0.0
    %2697 = vmatprep.subr.mxu0 0.0
    %2698 = vmatpush2.xpose.msra.mxu0 0.0
    %2699 = vmatprep.subr.mxu0 0.0
    %2700 = vmatpush2.xpose.msra.mxu0 0.0
    %2701 = vmatprep.subr.mxu0 0.0
    %2702 = vmatpush2.xpose.msra.mxu0 0.0
    %2703 = vmatprep.subr.mxu0 0.0
    %2704 = vmatpush2.xpose.msra.mxu0 0.0
    %2705 = vmatprep.subr.mxu0 0.0
    %2706 = vmatpush2.xpose.msra.mxu0 0.0
    %2707 = vmatprep.subr.mxu0 0.0
    %2708 = vmatpush2.xpose.msra.mxu0 0.0
    %2709 = vmatprep.subr.mxu0 0.0
    %2710 = vmatpush2.xpose.msra.mxu0 0.0
    %2711 = vmatprep.subr.mxu0 0.0
    %2712 = vmatpush2.xpose.msra.mxu0 0.0
    %2713 = vmatprep.subr.mxu0 0.0
    %2714 = vmatpush2.xpose.msra.mxu0 0.0
    %2715 = vmatprep.subr.mxu0 0.0
    %2716 = vmatpush2.xpose.msra.mxu0 0.0
    %2717 = vmatprep.mubr.f32.mxu0 %v2640
    %2718 = vmatmul.mubr.f32.gmra.mxu0 %v2636
    %v2719 = vpop.f32.mrf.mxu0
    %v2720 = vadd.f32 0.0, %v2719
    %v2721 = vpop.f32.mrf.mxu0
    %2722 = vdwg.mxu0
    %2723 = vmatprep.subr.mxu0 0.0
    %2724 = vmatpush1.xpose.msra.mxu0 0.0
    %2725 = vmatprep.subr.mxu0 0.0
    %2726 = vmatpush1.xpose.msra.mxu0 0.0
    %2727 = vmatprep.subr.mxu0 0.0
    %2728 = vmatpush1.xpose.msra.mxu0 0.0
    %2729 = vmatprep.subr.mxu0 0.0
    %2730 = vmatpush1.xpose.msra.mxu0 0.0
    %2731 = vmatprep.subr.mxu0 0.0
    %2732 = vmatpush1.xpose.msra.mxu0 0.0
    %2733 = vmatprep.subr.mxu0 0.0
    %2734 = vmatpush1.xpose.msra.mxu0 0.0
    %2735 = vmatprep.subr.mxu0 0.0
    %2736 = vmatpush1.xpose.msra.mxu0 0.0
    %2737 = vmatprep.subr.mxu0 0.0
    %2738 = vmatpush1.xpose.msra.mxu0 0.0
    %2739 = vmatprep.subr.mxu0 0.0
    %2740 = vmatpush1.xpose.msra.mxu0 0.0
    %2741 = vmatprep.subr.mxu0 0.0
    %2742 = vmatpush1.xpose.msra.mxu0 0.0
    %2743 = vmatprep.subr.mxu0 0.0
    %2744 = vmatpush1.xpose.msra.mxu0 0.0
    %2745 = vmatprep.subr.mxu0 0.0
    %2746 = vmatpush1.xpose.msra.mxu0 0.0
    %2747 = vmatprep.subr.mxu0 0.0
    %2748 = vmatpush1.xpose.msra.mxu0 0.0
    %2749 = vmatprep.subr.mxu0 0.0
    %2750 = vmatpush1.xpose.msra.mxu0 0.0
    %2751 = vmatprep.subr.mxu0 0.0
    %2752 = vmatpush1.xpose.msra.mxu0 0.0
    %2753 = vmatprep.subr.mxu0 %v2632
    %2754 = vmatpush1.xpose.msra.mxu0 %v2631
    %2755 = vmatprep.subr.mxu0 0.0
    %2756 = vmatpush2.xpose.msra.mxu0 0.0
    %2757 = vmatprep.subr.mxu0 0.0
    %2758 = vmatpush2.xpose.msra.mxu0 0.0
    %2759 = vmatprep.subr.mxu0 0.0
    %2760 = vmatpush2.xpose.msra.mxu0 0.0
    %2761 = vmatprep.subr.mxu0 0.0
    %2762 = vmatpush2.xpose.msra.mxu0 0.0
    %2763 = vmatprep.subr.mxu0 0.0
    %2764 = vmatpush2.xpose.msra.mxu0 0.0
    %2765 = vmatprep.subr.mxu0 0.0
    %2766 = vmatpush2.xpose.msra.mxu0 0.0
    %2767 = vmatprep.subr.mxu0 0.0
    %2768 = vmatpush2.xpose.msra.mxu0 0.0
    %2769 = vmatprep.subr.mxu0 0.0
    %2770 = vmatpush2.xpose.msra.mxu0 0.0
    %2771 = vmatprep.subr.mxu0 0.0
    %2772 = vmatpush2.xpose.msra.mxu0 0.0
    %2773 = vmatprep.subr.mxu0 0.0
    %2774 = vmatpush2.xpose.msra.mxu0 0.0
    %2775 = vmatprep.subr.mxu0 0.0
    %2776 = vmatpush2.xpose.msra.mxu0 0.0
    %2777 = vmatprep.subr.mxu0 0.0
    %2778 = vmatpush2.xpose.msra.mxu0 0.0
    %2779 = vmatprep.subr.mxu0 0.0
    %2780 = vmatpush2.xpose.msra.mxu0 0.0
    %2781 = vmatprep.subr.mxu0 0.0
    %2782 = vmatpush2.xpose.msra.mxu0 0.0
    %2783 = vmatprep.subr.mxu0 0.0
    %2784 = vmatpush2.xpose.msra.mxu0 0.0
    %2785 = vmatprep.subr.mxu0 0.0
    %2786 = vmatpush2.xpose.msra.mxu0 0.0
    %2787 = vmatprep.mubr.f32.mxu0 %v2648
    %2788 = vmatmul.mubr.f32.gmra.mxu0 %v2644
    %v2789 = vpop.f32.mrf.mxu0
    %v2790 = vadd.f32 %v2720, %v2789
    %v2791 = vpop.f32.mrf.mxu0
    %2792 = vdwg.mxu0
    %v2793 = vadd.f32 %v2450, %v2790
    %s2794 = sld [smem:[#allocation2]]
    %v2795 = vstv %s2794
    %v2796 = vadd.f32 %v2793, %v2795
    %v2797 = vsub.f32 0.0, %v2796
    %v2798 = vmul.f32 %v2797, 1.442695
    %v2799 = vpow.pop %v2798
    %v2800 = vadd.f32 %v2799, 1.0
    %v2801 = vrcp.pop %v2800
    %v2802 = vmul.f32 1.0, %v2801
    %vm2803 = vcmask 8192
    %2804 = vst.msk [vmem:[#allocation8] sm:$0x1] %vm2803, %v2802
    // Predicated region
    $region26: #{tpu_custom_call.1} parent=1 // pred_check
      _
    $region27: #{tpu_custom_call.1} parent=1 // pred_check_branch
      %2806 = sbr.rel (0) target = $region29
    $region28: #{tpu_custom_call.1} parent=1 // pred_region
      %s2808 = ssub.s32 16, 16
      %2809 = vsyncadd [#allocation5], %s2808
      %s2811 = sshll.u32 [#allocation8], 4
      %s2812 = int_to_ptr.vmem [resolvable:$true] %s2811
      %2814 = dma.vmem_to_hbm [thread:$0]  %s2812, 16, %s4, [#allocation5]
    $region29: #{tpu_custom_call.1} parent=1 // pred_fallthru
      _
    // Predicated region
    $region30: #{tpu_custom_call.1} parent=1 // pred_check
      _
    $region31: #{tpu_custom_call.1} parent=1 // pred_check_branch
      %2816 = sbr.rel (0) target = $region33
    $region32: #{tpu_custom_call.1} parent=1 // pred_region
      %2817 = dma.done [#allocation5], 16
    $region33: #{tpu_custom_call.1} parent=1 // pred_fallthru
      _
    %2818 = vsyncpa [#allocation4], 1
    %2819 = vsyncpa [#allocation7], 1
    %2820 = vsyncpa [#allocation5], 1

</llo_original>
